<compile_context>
chip_gen: v7x
topology: tpu7x:2x2x1
jax: 0.10.0
libtpu: 0.0.40
codegen_flags: <defaults>
</compile_context>

<pallas_src>
import jax
import jax.numpy as jnp
from jax.experimental import pallas as pl
from jax.experimental.pallas import tpu as pltpu

LN_EPS = 1e-5
LANE = 128
H1, H2, H3 = 512, 512, 256


def _ln_relu(z, p_ref):
    """bias-add + LayerNorm (biased var, eps=1e-5) + ReLU, all in f32.

    mean(z) and mean(z*z) are independent cross-lane reductions (overlap in the
    XLU slot); var = E[z^2] - mu^2 is clamped at 0 to guard f32 cancellation.
    """
    b = p_ref[0:1, :]
    g = p_ref[1:2, :]
    be = p_ref[2:3, :]
    z = z + b
    mu = jnp.mean(z, axis=-1, keepdims=True)
    ms = jnp.mean(z * z, axis=-1, keepdims=True)
    var = jnp.maximum(ms - mu * mu, 0.0)
    z = (z - mu) * jax.lax.rsqrt(var + LN_EPS) * g + be
    return jnp.maximum(z, 0.0)


def actor_kernel(ma_ref, x_ref,
                 w1_ref, p1_ref,
                 w2_ref, p2_ref,
                 w3_ref, p3_ref,
                 w4_ref, b4_ref,
                 o_ref):
    max_action = ma_ref[0, 0]
    x = x_ref[...]

    # Layer 1: Linear(state_dim, 512) -> LayerNorm -> ReLU
    h = _ln_relu(jnp.dot(x.astype(jnp.bfloat16), w1_ref[...],
                         preferred_element_type=jnp.float32), p1_ref)
    # TODO(synk): nn.Dropout(0.1) is stochastic only in training mode; eval forward is identity.

    # Layer 2: Linear(512, 512) -> LayerNorm -> ReLU
    h = _ln_relu(jnp.dot(h.astype(jnp.bfloat16), w2_ref[...],
                         preferred_element_type=jnp.float32), p2_ref)

    # Layer 3: Linear(512, 256) -> LayerNorm -> ReLU
    h = _ln_relu(jnp.dot(h.astype(jnp.bfloat16), w3_ref[...],
                         preferred_element_type=jnp.float32), p3_ref)

    # Layer 4: Linear(256, act_pad) -> max_action * tanh (lane-dense 128-wide store)
    out = jnp.dot(h.astype(jnp.bfloat16), w4_ref[...],
                  preferred_element_type=jnp.float32) + b4_ref[...]
    o_ref[...] = max_action * jnp.tanh(out)


def pack_actor_params(params):
    """One-time weight preprocessing, hoisted out of the per-call path.

    Casts w1..w4 to bf16, pads the final layer to a lane-dense 128 width, and packs
    each layer's (bias, gamma, beta) into a single [3, out] array (one DMA each).
    Call once and reuse; doing this per forward roughly doubles HBM traffic.
    """
    action_dim = params["w4"].shape[1]
    act_pad = ((action_dim + LANE - 1) // LANE) * LANE
    pad = act_pad - action_dim
    return {
        "w1": params["w1"].astype(jnp.bfloat16),
        "w2": params["w2"].astype(jnp.bfloat16),
        "w3": params["w3"].astype(jnp.bfloat16),
        "w4": jnp.pad(params["w4"], ((0, 0), (0, pad))).astype(jnp.bfloat16),
        "b4": jnp.pad(params["b4"], ((0, 0), (0, pad))),
        "p1": jnp.concatenate([params["b1"], params["g1"], params["be1"]], axis=0),
        "p2": jnp.concatenate([params["b2"], params["g2"], params["be2"]], axis=0),
        "p3": jnp.concatenate([params["b3"], params["g3"], params["be3"]], axis=0),
        "action_dim": action_dim,
    }


def actor_forward(state, packed, max_action, *, tile_b=1024):
    """state: [B, state_dim] f32. packed: output of pack_actor_params().
    Returns [B, action_dim] f32."""
    state = jnp.asarray(state, jnp.float32)
    batch, state_dim = state.shape
    action_dim = packed["action_dim"]
    act_pad = packed["w4"].shape[1]

    # --- batch tiling: sublane-align, cut into tb-row tiles ---
    b8 = ((batch + 7) // 8) * 8
    tb = min(tile_b, b8)
    # Guarantee >= 2 grid steps when the batch allows it so the "parallel" batch axis
    # can shard across v7x's two TensorCores (weights are tiny; duplication is free).
    if tb == b8 and b8 >= 16:
        tb = ((b8 // 2 + 7) // 8) * 8
    padded_b = pl.cdiv(b8, tb) * tb
    if padded_b != batch:
        # Zero-padded rows go through LayerNorm with var=0 -> rsqrt(eps) ~ 316; this is
        # finite (no NaN/Inf) and the rows are sliced off below — intentionally unmasked.
        state = jnp.pad(state, ((0, padded_b - batch), (0, 0)))
    grid = (padded_b // tb,)

    ma = jnp.full((1, 1), max_action, jnp.float32)  # SMEM scalar; no recompile per value

    def resident(shape):
        # Constant index map: fetched once, stays resident in VMEM across batch tiles.
        return pl.BlockSpec(shape, lambda i: (0, 0))

    in_specs = [
        pl.BlockSpec(memory_space=pltpu.MemorySpace.SMEM),   # max_action
        pl.BlockSpec((tb, state_dim), lambda i: (i, 0)),     # state tile
        resident((state_dim, H1)), resident((3, H1)),
        resident((H1, H2)),        resident((3, H2)),
        resident((H2, H3)),        resident((3, H3)),
        resident((H3, act_pad)),   resident((1, act_pad)),
    ]
    out_spec = pl.BlockSpec((tb, act_pad), lambda i: (i, 0))

    # --- VMEM budget: (double-buffered) resident weights + double-buffered in/out tiles
    #     + live f32 intermediates (incl. bf16 cast copies), ~1.5x headroom.
    resident_bytes = 2 * (packed["w1"].size + packed["w2"].size
                          + packed["w3"].size + packed["w4"].size) \
                   + 4 * (packed["p1"].size + packed["p2"].size
                          + packed["p3"].size + packed["b4"].size)
    tile_bytes = 2 * tb * state_dim * 4 + 2 * tb * act_pad * 4
    interm_bytes = 8 * tb * H1 * 4
    vmem_limit = int(min(max(1.5 * (2 * resident_bytes + tile_bytes + interm_bytes),
                             16 << 20), 48 << 20))

    flops = 2 * padded_b * (state_dim * H1 + H1 * H2 + H2 * H3 + H3 * act_pad)
    cost = pl.CostEstimate(
        flops=flops,
        transcendentals=padded_b * (act_pad + 3),            # tanh + per-layer rsqrt
        bytes_accessed=resident_bytes + 4 * state.size + 4 * padded_b * act_pad,
    )

    out = pl.pallas_call(
        actor_kernel,
        out_shape=jax.ShapeDtypeStruct((padded_b, act_pad), jnp.float32),
        grid=grid,
        in_specs=in_specs,
        out_specs=out_spec,
        compiler_params=pltpu.CompilerParams(
            dimension_semantics=("parallel",),                # shards batch across v7x TCs
            vmem_limit_bytes=vmem_limit),
        cost_estimate=cost,
    )(ma, state, packed["w1"], packed["p1"], packed["w2"], packed["p2"],
      packed["w3"], packed["p3"], packed["w4"], packed["b4"])

    return out[:batch, :action_dim]


def init_actor_params(key, state_dim, action_dim):
    """Mimics PyTorch Linear defaults (uniform +/- 1/sqrt(fan_in)); f32 master params.
    Weights stored [in, out]; biases / LN params stored as [1, out] rows."""
    def linear(k, fan_in, fan_out):
        kw, kb = jax.random.split(k)
        bound = 1.0 / (fan_in ** 0.5)
        w = jax.random.uniform(kw, (fan_in, fan_out), jnp.float32, -bound, bound)
        b = jax.random.uniform(kb, (1, fan_out), jnp.float32, -bound, bound)
        return w, b

    k1, k2, k3, k4 = jax.random.split(key, 4)
    w1, b1 = linear(k1, state_dim, H1)
    w2, b2 = linear(k2, H1, H2)
    w3, b3 = linear(k3, H2, H3)
    w4, b4 = linear(k4, H3, action_dim)
    return {
        "w1": w1, "b1": b1, "g1": jnp.ones((1, H1), jnp.float32), "be1": jnp.zeros((1, H1), jnp.float32),
        "w2": w2, "b2": b2, "g2": jnp.ones((1, H2), jnp.float32), "be2": jnp.zeros((1, H2), jnp.float32),
        "w3": w3, "b3": b3, "g3": jnp.ones((1, H3), jnp.float32), "be3": jnp.zeros((1, H3), jnp.float32),
        "w4": w4, "b4": b4,
    }


def actor_reference(state, params, max_action):
    """Pure-JAX f32 reference matching the PyTorch eval-mode forward."""
    def ln(h, g, b):
        mu = jnp.mean(h, axis=-1, keepdims=True)
        var = jnp.mean((h - mu) ** 2, axis=-1, keepdims=True)
        return (h - mu) / jnp.sqrt(var + LN_EPS) * g + b

    h = jnp.maximum(ln(state @ params["w1"] + params["b1"], params["g1"], params["be1"]), 0.0)
    h = jnp.maximum(ln(h @ params["w2"] + params["b2"], params["g2"], params["be2"]), 0.0)
    h = jnp.maximum(ln(h @ params["w3"] + params["b3"], params["g3"], params["be3"]), 0.0)
    return max_action * jnp.tanh(h @ params["w4"] + params["b4"])


if __name__ == "__main__":
    key = jax.random.PRNGKey(0)
    k_params, k_state1, k_state2 = jax.random.split(key, 3)

    state_dim, action_dim = 16, 4
    max_action = 1.0

    params = init_actor_params(k_params, state_dim, action_dim)
    packed = pack_actor_params(params)   # one-time preprocessing, hoisted out of the call path

    # Small single-tile batch.
    state = jax.random.normal(k_state1, (8, state_dim), jnp.float32)
    out = jax.block_until_ready(actor_forward(state, packed, max_action))
    ref = actor_reference(state, params, max_action)
    assert out.shape == (8, action_dim)
    # Kernel uses bf16 weights with f32 accumulation; f32 reference needs a loosened tolerance.
    assert jnp.allclose(out, ref, atol=5e-2, rtol=5e-2), "mismatch vs reference (batch=8)"

    # Mid-size batch: exercises the >=2 grid-tiles path (megacore split + padded rows).
    state2 = jax.random.normal(k_state2, (40, state_dim), jnp.float32)
    out2 = jax.block_until_ready(actor_forward(state2, packed, max_action))
    ref2 = actor_reference(state2, params, max_action)
    assert out2.shape == (40, action_dim)
    assert jnp.allclose(out2, ref2, atol=5e-2, rtol=5e-2), "mismatch vs reference (batch=40)"

    print("KERNEL_OK")
</pallas_src>

<mosaic_0001>
module attributes {stable_mosaic.version = 11 : i64} {
  func.func @actor_kernel(%arg0: i32, %arg1: memref<1x1xf32, #tpu.memory_space<smem>>, %arg2: memref<8x16xf32, #tpu.memory_space<vmem>>, %arg3: memref<16x512xbf16, #tpu.memory_space<vmem>>, %arg4: memref<3x512xf32, #tpu.memory_space<vmem>>, %arg5: memref<512x512xbf16, #tpu.memory_space<vmem>>, %arg6: memref<3x512xf32, #tpu.memory_space<vmem>>, %arg7: memref<512x256xbf16, #tpu.memory_space<vmem>>, %arg8: memref<3x256xf32, #tpu.memory_space<vmem>>, %arg9: memref<256x128xbf16, #tpu.memory_space<vmem>>, %arg10: memref<1x128xf32, #tpu.memory_space<vmem>>, %arg11: memref<8x128xf32, #tpu.memory_space<vmem>>) attributes {dimension_semantics = [#tpu.dimension_semantics<parallel>], iteration_bounds = array<i64: 1>, scalar_prefetch = 0 : i64, scratch_operands = 0 : i64, tpu.core_type = #tpu.core_type<tc>, window_params = [{transform_indices = @transform_0, window_bounds = array<i64: 1, 1>}, {transform_indices = @transform_1, window_bounds = array<i64: 8, 16>}, {pipeline_mode = #tpu.pipeline_mode<synchronous>, transform_indices = @transform_2, window_bounds = array<i64: 16, 512>}, {pipeline_mode = #tpu.pipeline_mode<synchronous>, transform_indices = @transform_3, window_bounds = array<i64: 3, 512>}, {pipeline_mode = #tpu.pipeline_mode<synchronous>, transform_indices = @transform_4, window_bounds = array<i64: 512, 512>}, {pipeline_mode = #tpu.pipeline_mode<synchronous>, transform_indices = @transform_5, window_bounds = array<i64: 3, 512>}, {pipeline_mode = #tpu.pipeline_mode<synchronous>, transform_indices = @transform_6, window_bounds = array<i64: 512, 256>}, {pipeline_mode = #tpu.pipeline_mode<synchronous>, transform_indices = @transform_7, window_bounds = array<i64: 3, 256>}, {pipeline_mode = #tpu.pipeline_mode<synchronous>, transform_indices = @transform_8, window_bounds = array<i64: 256, 128>}, {pipeline_mode = #tpu.pipeline_mode<synchronous>, transform_indices = @transform_9, window_bounds = array<i64: 1, 128>}, {transform_indices = @transform_10, window_bounds = array<i64: 8, 128>}]} {
    %c0 = arith.constant 0 : index
    %c0_0 = arith.constant 0 : index
    %0 = memref.load %arg1[%c0, %c0_0] : memref<1x1xf32, #tpu.memory_space<smem>>
    %c0_1 = arith.constant 0 : index
    %c0_2 = arith.constant 0 : index
    %1 = vector.load %arg2[%c0_1, %c0_2] : memref<8x16xf32, #tpu.memory_space<vmem>>, vector<8x16xf32>
    %2 = arith.truncf %1 : vector<8x16xf32> to vector<8x16xbf16>
    %c0_3 = arith.constant 0 : index
    %c0_4 = arith.constant 0 : index
    %3 = vector.load %arg3[%c0_3, %c0_4] : memref<16x512xbf16, #tpu.memory_space<vmem>>, vector<16x512xbf16>
    %cst = arith.constant dense<0.000000e+00> : vector<8x512xf32>
    %4 = tpu.matmul %2, %3, %cst {dimension_numbers = #tpu.dot_dimension_numbers<[1], [0], [0], [1], [0, 0, 1, 1], [], []>} : vector<8x16xbf16>, vector<16x512xbf16>, vector<8x512xf32> -> vector<8x512xf32>
    %c0_5 = arith.constant 0 : index
    %c0_6 = arith.constant 0 : index
    %5 = vector.load %arg4[%c0_5, %c0_6] : memref<3x512xf32, #tpu.memory_space<vmem>>, vector<1x512xf32>
    %c1 = arith.constant 1 : index
    %c0_7 = arith.constant 0 : index
    %6 = vector.load %arg4[%c1, %c0_7] : memref<3x512xf32, #tpu.memory_space<vmem>>, vector<1x512xf32>
    %c2 = arith.constant 2 : index
    %c0_8 = arith.constant 0 : index
    %7 = vector.load %arg4[%c2, %c0_8] : memref<3x512xf32, #tpu.memory_space<vmem>>, vector<1x512xf32>
    %8 = vector.broadcast %5 : vector<1x512xf32> to vector<8x512xf32>
    %9 = arith.addf %4, %8 : vector<8x512xf32>
    %cst_9 = arith.constant dense<0.000000e+00> : vector<8xf32>
    %10 = vector.multi_reduction <add>, %9, %cst_9 [1] : vector<8x512xf32> to vector<8xf32>
    %11 = vector.shape_cast %10 : vector<8xf32> to vector<8x1xf32>
    %cst_10 = arith.constant 5.120000e+02 : f32
    %12 = vector.broadcast %cst_10 : f32 to vector<8x1xf32>
    %13 = arith.divf %11, %12 : vector<8x1xf32>
    %14 = arith.mulf %9, %9 : vector<8x512xf32>
    %cst_11 = arith.constant dense<0.000000e+00> : vector<8xf32>
    %15 = vector.multi_reduction <add>, %14, %cst_11 [1] : vector<8x512xf32> to vector<8xf32>
    %16 = vector.shape_cast %15 : vector<8xf32> to vector<8x1xf32>
    %cst_12 = arith.constant 5.120000e+02 : f32
    %17 = vector.broadcast %cst_12 : f32 to vector<8x1xf32>
    %18 = arith.divf %16, %17 : vector<8x1xf32>
    %19 = arith.mulf %13, %13 : vector<8x1xf32>
    %20 = arith.subf %18, %19 : vector<8x1xf32>
    %cst_13 = arith.constant 0.000000e+00 : f32
    %21 = vector.broadcast %cst_13 : f32 to vector<8x1xf32>
    %22 = arith.maximumf %20, %21 : vector<8x1xf32>
    %23 = vector.broadcast %13 : vector<8x1xf32> to vector<8x512xf32>
    %24 = arith.subf %9, %23 : vector<8x512xf32>
    %cst_14 = arith.constant 9.99999974E-6 : f32
    %25 = vector.broadcast %cst_14 : f32 to vector<8x1xf32>
    %26 = arith.addf %22, %25 : vector<8x1xf32>
    %27 = math.rsqrt %26 : vector<8x1xf32>
    %28 = vector.broadcast %27 : vector<8x1xf32> to vector<8x512xf32>
    %29 = arith.mulf %24, %28 : vector<8x512xf32>
    %30 = vector.broadcast %6 : vector<1x512xf32> to vector<8x512xf32>
    %31 = arith.mulf %29, %30 : vector<8x512xf32>
    %32 = vector.broadcast %7 : vector<1x512xf32> to vector<8x512xf32>
    %33 = arith.addf %31, %32 : vector<8x512xf32>
    %cst_15 = arith.constant 0.000000e+00 : f32
    %34 = vector.broadcast %cst_15 : f32 to vector<8x512xf32>
    %35 = arith.maximumf %33, %34 : vector<8x512xf32>
    %36 = arith.truncf %35 : vector<8x512xf32> to vector<8x512xbf16>
    %c0_16 = arith.constant 0 : index
    %c0_17 = arith.constant 0 : index
    %37 = vector.load %arg5[%c0_16, %c0_17] : memref<512x512xbf16, #tpu.memory_space<vmem>>, vector<512x512xbf16>
    %cst_18 = arith.constant dense<0.000000e+00> : vector<8x512xf32>
    %38 = tpu.matmul %36, %37, %cst_18 {dimension_numbers = #tpu.dot_dimension_numbers<[1], [0], [0], [1], [0, 0, 1, 1], [], []>} : vector<8x512xbf16>, vector<512x512xbf16>, vector<8x512xf32> -> vector<8x512xf32>
    %c0_19 = arith.constant 0 : index
    %c0_20 = arith.constant 0 : index
    %39 = vector.load %arg6[%c0_19, %c0_20] : memref<3x512xf32, #tpu.memory_space<vmem>>, vector<1x512xf32>
    %c1_21 = arith.constant 1 : index
    %c0_22 = arith.constant 0 : index
    %40 = vector.load %arg6[%c1_21, %c0_22] : memref<3x512xf32, #tpu.memory_space<vmem>>, vector<1x512xf32>
    %c2_23 = arith.constant 2 : index
    %c0_24 = arith.constant 0 : index
    %41 = vector.load %arg6[%c2_23, %c0_24] : memref<3x512xf32, #tpu.memory_space<vmem>>, vector<1x512xf32>
    %42 = vector.broadcast %39 : vector<1x512xf32> to vector<8x512xf32>
    %43 = arith.addf %38, %42 : vector<8x512xf32>
    %cst_25 = arith.constant dense<0.000000e+00> : vector<8xf32>
    %44 = vector.multi_reduction <add>, %43, %cst_25 [1] : vector<8x512xf32> to vector<8xf32>
    %45 = vector.shape_cast %44 : vector<8xf32> to vector<8x1xf32>
    %cst_26 = arith.constant 5.120000e+02 : f32
    %46 = vector.broadcast %cst_26 : f32 to vector<8x1xf32>
    %47 = arith.divf %45, %46 : vector<8x1xf32>
    %48 = arith.mulf %43, %43 : vector<8x512xf32>
    %cst_27 = arith.constant dense<0.000000e+00> : vector<8xf32>
    %49 = vector.multi_reduction <add>, %48, %cst_27 [1] : vector<8x512xf32> to vector<8xf32>
    %50 = vector.shape_cast %49 : vector<8xf32> to vector<8x1xf32>
    %cst_28 = arith.constant 5.120000e+02 : f32
    %51 = vector.broadcast %cst_28 : f32 to vector<8x1xf32>
    %52 = arith.divf %50, %51 : vector<8x1xf32>
    %53 = arith.mulf %47, %47 : vector<8x1xf32>
    %54 = arith.subf %52, %53 : vector<8x1xf32>
    %cst_29 = arith.constant 0.000000e+00 : f32
    %55 = vector.broadcast %cst_29 : f32 to vector<8x1xf32>
    %56 = arith.maximumf %54, %55 : vector<8x1xf32>
    %57 = vector.broadcast %47 : vector<8x1xf32> to vector<8x512xf32>
    %58 = arith.subf %43, %57 : vector<8x512xf32>
    %cst_30 = arith.constant 9.99999974E-6 : f32
    %59 = vector.broadcast %cst_30 : f32 to vector<8x1xf32>
    %60 = arith.addf %56, %59 : vector<8x1xf32>
    %61 = math.rsqrt %60 : vector<8x1xf32>
    %62 = vector.broadcast %61 : vector<8x1xf32> to vector<8x512xf32>
    %63 = arith.mulf %58, %62 : vector<8x512xf32>
    %64 = vector.broadcast %40 : vector<1x512xf32> to vector<8x512xf32>
    %65 = arith.mulf %63, %64 : vector<8x512xf32>
    %66 = vector.broadcast %41 : vector<1x512xf32> to vector<8x512xf32>
    %67 = arith.addf %65, %66 : vector<8x512xf32>
    %cst_31 = arith.constant 0.000000e+00 : f32
    %68 = vector.broadcast %cst_31 : f32 to vector<8x512xf32>
    %69 = arith.maximumf %67, %68 : vector<8x512xf32>
    %70 = arith.truncf %69 : vector<8x512xf32> to vector<8x512xbf16>
    %c0_32 = arith.constant 0 : index
    %c0_33 = arith.constant 0 : index
    %71 = vector.load %arg7[%c0_32, %c0_33] : memref<512x256xbf16, #tpu.memory_space<vmem>>, vector<512x256xbf16>
    %cst_34 = arith.constant dense<0.000000e+00> : vector<8x256xf32>
    %72 = tpu.matmul %70, %71, %cst_34 {dimension_numbers = #tpu.dot_dimension_numbers<[1], [0], [0], [1], [0, 0, 1, 1], [], []>} : vector<8x512xbf16>, vector<512x256xbf16>, vector<8x256xf32> -> vector<8x256xf32>
    %c0_35 = arith.constant 0 : index
    %c0_36 = arith.constant 0 : index
    %73 = vector.load %arg8[%c0_35, %c0_36] : memref<3x256xf32, #tpu.memory_space<vmem>>, vector<1x256xf32>
    %c1_37 = arith.constant 1 : index
    %c0_38 = arith.constant 0 : index
    %74 = vector.load %arg8[%c1_37, %c0_38] : memref<3x256xf32, #tpu.memory_space<vmem>>, vector<1x256xf32>
    %c2_39 = arith.constant 2 : index
    %c0_40 = arith.constant 0 : index
    %75 = vector.load %arg8[%c2_39, %c0_40] : memref<3x256xf32, #tpu.memory_space<vmem>>, vector<1x256xf32>
    %76 = vector.broadcast %73 : vector<1x256xf32> to vector<8x256xf32>
    %77 = arith.addf %72, %76 : vector<8x256xf32>
    %cst_41 = arith.constant dense<0.000000e+00> : vector<8xf32>
    %78 = vector.multi_reduction <add>, %77, %cst_41 [1] : vector<8x256xf32> to vector<8xf32>
    %79 = vector.shape_cast %78 : vector<8xf32> to vector<8x1xf32>
    %cst_42 = arith.constant 2.560000e+02 : f32
    %80 = vector.broadcast %cst_42 : f32 to vector<8x1xf32>
    %81 = arith.divf %79, %80 : vector<8x1xf32>
    %82 = arith.mulf %77, %77 : vector<8x256xf32>
    %cst_43 = arith.constant dense<0.000000e+00> : vector<8xf32>
    %83 = vector.multi_reduction <add>, %82, %cst_43 [1] : vector<8x256xf32> to vector<8xf32>
    %84 = vector.shape_cast %83 : vector<8xf32> to vector<8x1xf32>
    %cst_44 = arith.constant 2.560000e+02 : f32
    %85 = vector.broadcast %cst_44 : f32 to vector<8x1xf32>
    %86 = arith.divf %84, %85 : vector<8x1xf32>
    %87 = arith.mulf %81, %81 : vector<8x1xf32>
    %88 = arith.subf %86, %87 : vector<8x1xf32>
    %cst_45 = arith.constant 0.000000e+00 : f32
    %89 = vector.broadcast %cst_45 : f32 to vector<8x1xf32>
    %90 = arith.maximumf %88, %89 : vector<8x1xf32>
    %91 = vector.broadcast %81 : vector<8x1xf32> to vector<8x256xf32>
    %92 = arith.subf %77, %91 : vector<8x256xf32>
    %cst_46 = arith.constant 9.99999974E-6 : f32
    %93 = vector.broadcast %cst_46 : f32 to vector<8x1xf32>
    %94 = arith.addf %90, %93 : vector<8x1xf32>
    %95 = math.rsqrt %94 : vector<8x1xf32>
    %96 = vector.broadcast %95 : vector<8x1xf32> to vector<8x256xf32>
    %97 = arith.mulf %92, %96 : vector<8x256xf32>
    %98 = vector.broadcast %74 : vector<1x256xf32> to vector<8x256xf32>
    %99 = arith.mulf %97, %98 : vector<8x256xf32>
    %100 = vector.broadcast %75 : vector<1x256xf32> to vector<8x256xf32>
    %101 = arith.addf %99, %100 : vector<8x256xf32>
    %cst_47 = arith.constant 0.000000e+00 : f32
    %102 = vector.broadcast %cst_47 : f32 to vector<8x256xf32>
    %103 = arith.maximumf %101, %102 : vector<8x256xf32>
    %104 = arith.truncf %103 : vector<8x256xf32> to vector<8x256xbf16>
    %c0_48 = arith.constant 0 : index
    %c0_49 = arith.constant 0 : index
    %105 = vector.load %arg9[%c0_48, %c0_49] : memref<256x128xbf16, #tpu.memory_space<vmem>>, vector<256x128xbf16>
    %cst_50 = arith.constant dense<0.000000e+00> : vector<8x128xf32>
    %106 = tpu.matmul %104, %105, %cst_50 {dimension_numbers = #tpu.dot_dimension_numbers<[1], [0], [0], [1], [0, 0, 1, 1], [], []>} : vector<8x256xbf16>, vector<256x128xbf16>, vector<8x128xf32> -> vector<8x128xf32>
    %c0_51 = arith.constant 0 : index
    %c0_52 = arith.constant 0 : index
    %107 = vector.load %arg10[%c0_51, %c0_52] : memref<1x128xf32, #tpu.memory_space<vmem>>, vector<1x128xf32>
    %108 = vector.broadcast %107 : vector<1x128xf32> to vector<8x128xf32>
    %109 = arith.addf %106, %108 : vector<8x128xf32>
    %110 = math.tanh %109 : vector<8x128xf32>
    %111 = vector.broadcast %0 : f32 to vector<8x128xf32>
    %112 = arith.mulf %111, %110 : vector<8x128xf32>
    %c0_53 = arith.constant 0 : index
    %c0_54 = arith.constant 0 : index
    %113 = vector.load %arg11[%c0_53, %c0_54] : memref<8x128xf32, #tpu.memory_space<vmem>>, vector<8x128xf32>
    tpu.vector_store %arg11[%c0_53, %c0_54], %112 {strides = array<i32>} : memref<8x128xf32, #tpu.memory_space<vmem>>, vector<8x128xf32>,
    return
  }
  func.func @transform_0(%arg0: i32) -> (i32, i32) {
    %c0_i32 = arith.constant 0 : i32
    %c0_i32_0 = arith.constant 0 : i32
    %c0_i32_1 = arith.constant 0 : i32
    return %c0_i32, %c0_i32_0 : i32, i32
  }
  func.func @transform_1(%arg0: i32) -> (i32, i32) {
    %c0_i32 = arith.constant 0 : i32
    %c0_i32_0 = arith.constant 0 : i32
    return %arg0, %c0_i32 : i32, i32
  }
  func.func @transform_2(%arg0: i32) -> (i32, i32) {
    %c0_i32 = arith.constant 0 : i32
    %c0_i32_0 = arith.constant 0 : i32
    %c0_i32_1 = arith.constant 0 : i32
    return %c0_i32, %c0_i32_0 : i32, i32
  }
  func.func @transform_3(%arg0: i32) -> (i32, i32) {
    %c0_i32 = arith.constant 0 : i32
    %c0_i32_0 = arith.constant 0 : i32
    %c0_i32_1 = arith.constant 0 : i32
    return %c0_i32, %c0_i32_0 : i32, i32
  }
  func.func @transform_4(%arg0: i32) -> (i32, i32) {
    %c0_i32 = arith.constant 0 : i32
    %c0_i32_0 = arith.constant 0 : i32
    %c0_i32_1 = arith.constant 0 : i32
    return %c0_i32, %c0_i32_0 : i32, i32
  }
  func.func @transform_5(%arg0: i32) -> (i32, i32) {
    %c0_i32 = arith.constant 0 : i32
    %c0_i32_0 = arith.constant 0 : i32
    %c0_i32_1 = arith.constant 0 : i32
    return %c0_i32, %c0_i32_0 : i32, i32
  }
  func.func @transform_6(%arg0: i32) -> (i32, i32) {
    %c0_i32 = arith.constant 0 : i32
    %c0_i32_0 = arith.constant 0 : i32
    %c0_i32_1 = arith.constant 0 : i32
    return %c0_i32, %c0_i32_0 : i32, i32
  }
  func.func @transform_7(%arg0: i32) -> (i32, i32) {
    %c0_i32 = arith.constant 0 : i32
    %c0_i32_0 = arith.constant 0 : i32
    %c0_i32_1 = arith.constant 0 : i32
    return %c0_i32, %c0_i32_0 : i32, i32
  }
  func.func @transform_8(%arg0: i32) -> (i32, i32) {
    %c0_i32 = arith.constant 0 : i32
    %c0_i32_0 = arith.constant 0 : i32
    %c0_i32_1 = arith.constant 0 : i32
    return %c0_i32, %c0_i32_0 : i32, i32
  }
  func.func @transform_9(%arg0: i32) -> (i32, i32) {
    %c0_i32 = arith.constant 0 : i32
    %c0_i32_0 = arith.constant 0 : i32
    %c0_i32_1 = arith.constant 0 : i32
    return %c0_i32, %c0_i32_0 : i32, i32
  }
  func.func @transform_10(%arg0: i32) -> (i32, i32) {
    %c0_i32 = arith.constant 0 : i32
    %c0_i32_0 = arith.constant 0 : i32
    return %arg0, %c0_i32 : i32, i32
  }
}

</mosaic_0001>

<llo_original>
// kernel: tpu_custom_call.1
$region0: #{tpu_custom_call.1}
  #allocation0 [shape = 'u32[]', space=smem, size = 0x4, offset = 0x4, fixed_abs, tag = 'smem constant byte address 0x4 - core index']
  #allocation1 [shape = 'u32[144,128]{1,0:T(1,128)}', space=vmem, size = 0x12000, scoped, tag = 'internal scratch']
  #allocation2 [shape = 'f32[1,1]{1,0:T(1,128)S(6)}', space=smem, size = 0x200, scoped, tag = 'scoped memory for tpu_custom_call.1']
  %s0 = inlined_call_operand.<no memory space> [shape: f32[1,1], index: 0, kind: input, shape index: {}]
  %s1 = inlined_call_operand.hbm [shape: f32[8,16], index: 1, kind: input, shape index: {}]
  %s2 = inlined_call_operand.hbm [shape: bf16[16,512], index: 2, kind: input, shape index: {}]
  %s3 = inlined_call_operand.hbm [shape: f32[3,512], index: 3, kind: input, shape index: {}]
  %s4 = inlined_call_operand.hbm [shape: bf16[512,512], index: 4, kind: input, shape index: {}]
  %s5 = inlined_call_operand.vmem [shape: f32[3,512], index: 5, kind: input, shape index: {}]
  %s6 = inlined_call_operand.hbm [shape: bf16[512,256], index: 6, kind: input, shape index: {}]
  %s7 = inlined_call_operand.vmem [shape: f32[3,256], index: 7, kind: input, shape index: {}]
  %s8 = inlined_call_operand.hbm [shape: bf16[256,128], index: 8, kind: input, shape index: {}]
  %s9 = inlined_call_operand.vmem [shape: f32[1,128], index: 9, kind: input, shape index: {}]
  %s10 = inlined_call_operand.hbm [shape: f32[8,128], index: 10, kind: output, shape index: {}]
  %s11 = sld [smem:[#allocation0]]
  $region74: #{tpu_custom_call.1} parent=0
    _
  %s13 = ssub.s32 1, %s11
  %s14 = scalar_select 0, %s13, %s11
  %15 = sst [smem:[#allocation2]] %s0
  $region1: #{tpu_custom_call.1} parent=0
    #allocation3 [shape = 'u8[4096]{0}', space=vmem, size = 0x1000, scoped, tag = 'input window, operand 1, single buffered']
    #allocation4 [shape = 's32[1]{0}', space=sflag, size = 0x4, scoped, tag = 'scoped memory for tpu_custom_call.1']
    #allocation5 [shape = 's32[1]{0}', space=sflag, size = 0x4, scoped, tag = 'scoped memory for tpu_custom_call.1']
    #allocation6 [shape = 'u8[16384]{0}', space=vmem, size = 0x4000, scoped, tag = 'input window, operand 2, single buffered']
    #allocation7 [shape = 's32[1]{0}', space=sflag, size = 0x4, scoped, tag = 'scoped memory for tpu_custom_call.1']
    #allocation8 [shape = 'u8[8192]{0}', space=vmem, size = 0x2000, scoped, tag = 'input window, operand 3, single buffered']
    #allocation9 [shape = 'u8[524288]{0}', space=vmem, size = 0x80000, scoped, tag = 'input window, operand 4, single buffered']
    #allocation10 [shape = 's32[1]{0}', space=sflag, size = 0x4, scoped, tag = 'scoped memory for tpu_custom_call.1']
    #allocation11 [shape = 'u8[262144]{0}', space=vmem, size = 0x40000, scoped, tag = 'input window, operand 6, single buffered']
    #allocation12 [shape = 'u8[65536]{0}', space=vmem, size = 0x10000, scoped, tag = 'input window, operand 8, single buffered']
    #allocation13 [shape = 's32[1]{0}', space=sflag, size = 0x4, scoped, tag = 'scoped memory for tpu_custom_call.1']
    #allocation14 [shape = 'u8[4096]{0}', space=vmem, size = 0x1000, scoped, tag = 'output window, operand 0, single buffered']
    %16 = vsyncpa [#allocation4], 0
    %17 = vsyncpa [#allocation7], 0
    %18 = vsyncpa [#allocation10], 0
    %19 = vsyncpa [#allocation13], 0
    %20 = vsyncpa [#allocation5], 0
    // Predicated region
    $region2: #{tpu_custom_call.1} parent=1 // pred_check
      _
    $region3: #{tpu_custom_call.1} parent=1 // pred_check_branch
      %22 = sbr.rel (0) target = $region5
    $region4: #{tpu_custom_call.1} parent=1 // pred_region
      _
    $region5: #{tpu_custom_call.1} parent=1 // pred_fallthru
      _
    // Predicated region
    $region6: #{tpu_custom_call.1} parent=1 // pred_check
      _
    $region7: #{tpu_custom_call.1} parent=1 // pred_check_branch
      %24 = sbr.rel (0) target = $region9
    $region8: #{tpu_custom_call.1} parent=1 // pred_region
      %s26 = ssub.s32 128, 128
      %27 = vsyncadd [#allocation4], %s26
      %s29 = sshll.u32 [#allocation3], 4
      %s30 = int_to_ptr.vmem [resolvable:$true] %s29
      %32 = dma.hbm_to_vmem [thread:$0]  %s1, 128, %s30, [#allocation4]
    $region9: #{tpu_custom_call.1} parent=1 // pred_fallthru
      _
    // Predicated region
    $region10: #{tpu_custom_call.1} parent=1 // pred_check
      _
    $region11: #{tpu_custom_call.1} parent=1 // pred_check_branch
      %34 = sbr.rel (0) target = $region13
    $region12: #{tpu_custom_call.1} parent=1 // pred_region
      %s36 = ssub.s32 512, 512
      %37 = vsyncadd [#allocation7], %s36
      %s38 = sshll.u32 [#allocation6], 4
      %s39 = int_to_ptr.vmem [resolvable:$true] %s38
      %44 = dma.hbm_to_vmem [thread:$0]  %s2, 512, %s39, [#allocation7], 256, 256, 16
    $region13: #{tpu_custom_call.1} parent=1 // pred_fallthru
      _
    // Predicated region
    $region14: #{tpu_custom_call.1} parent=1 // pred_check
      _
    $region15: #{tpu_custom_call.1} parent=1 // pred_check_branch
      %46 = sbr.rel (0) target = $region17
    $region16: #{tpu_custom_call.1} parent=1 // pred_region
      %s48 = ssub.s32 256, 256
      %49 = vsyncadd [#allocation7], %s48
      %s51 = sshll.u32 [#allocation8], 4
      %s52 = int_to_ptr.vmem [resolvable:$true] %s51
      %54 = dma.hbm_to_vmem [thread:$0]  %s3, 256, %s52, [#allocation7]
    $region17: #{tpu_custom_call.1} parent=1 // pred_fallthru
      _
    // Predicated region
    $region18: #{tpu_custom_call.1} parent=1 // pred_check
      _
    $region19: #{tpu_custom_call.1} parent=1 // pred_check_branch
      %56 = sbr.rel (0) target = $region21
    $region20: #{tpu_custom_call.1} parent=1 // pred_region
      %s58 = ssub.s32 16384, 16384
      %59 = vsyncadd [#allocation10], %s58
      %s60 = sshll.u32 [#allocation9], 4
      %s61 = int_to_ptr.vmem [resolvable:$true] %s60
      %66 = dma.hbm_to_vmem [thread:$0]  %s4, 16384, %s61, [#allocation10], 256, 256, 16
    $region21: #{tpu_custom_call.1} parent=1 // pred_fallthru
      _
    // Predicated region
    $region22: #{tpu_custom_call.1} parent=1 // pred_check
      _
    $region23: #{tpu_custom_call.1} parent=1 // pred_check_branch
      %68 = sbr.rel (0) target = $region25
    $region24: #{tpu_custom_call.1} parent=1 // pred_region
      _
    $region25: #{tpu_custom_call.1} parent=1 // pred_fallthru
      _
    // Predicated region
    $region26: #{tpu_custom_call.1} parent=1 // pred_check
      _
    $region27: #{tpu_custom_call.1} parent=1 // pred_check_branch
      %70 = sbr.rel (0) target = $region29
    $region28: #{tpu_custom_call.1} parent=1 // pred_region
      %s72 = ssub.s32 8192, 8192
      %73 = vsyncadd [#allocation10], %s72
      %s74 = sshll.u32 [#allocation11], 4
      %s75 = int_to_ptr.vmem [resolvable:$true] %s74
      %80 = dma.hbm_to_vmem [thread:$0]  %s6, 8192, %s75, [#allocation10], 128, 128, 8
    $region29: #{tpu_custom_call.1} parent=1 // pred_fallthru
      _
    // Predicated region
    $region30: #{tpu_custom_call.1} parent=1 // pred_check
      _
    $region31: #{tpu_custom_call.1} parent=1 // pred_check_branch
      %82 = sbr.rel (0) target = $region33
    $region32: #{tpu_custom_call.1} parent=1 // pred_region
      _
    $region33: #{tpu_custom_call.1} parent=1 // pred_fallthru
      _
    // Predicated region
    $region34: #{tpu_custom_call.1} parent=1 // pred_check
      _
    $region35: #{tpu_custom_call.1} parent=1 // pred_check_branch
      %84 = sbr.rel (0) target = $region37
    $region36: #{tpu_custom_call.1} parent=1 // pred_region
      %s86 = ssub.s32 2048, 2048
      %87 = vsyncadd [#allocation13], %s86
      %s88 = sshll.u32 [#allocation12], 4
      %s89 = int_to_ptr.vmem [resolvable:$true] %s88
      %94 = dma.hbm_to_vmem [thread:$0]  %s8, 2048, %s89, [#allocation13], 64, 64, 4
    $region37: #{tpu_custom_call.1} parent=1 // pred_fallthru
      _
    // Predicated region
    $region38: #{tpu_custom_call.1} parent=1 // pred_check
      _
    $region39: #{tpu_custom_call.1} parent=1 // pred_check_branch
      %96 = sbr.rel (0) target = $region41
    $region40: #{tpu_custom_call.1} parent=1 // pred_region
      _
    $region41: #{tpu_custom_call.1} parent=1 // pred_fallthru
      _
    // Predicated region
    $region42: #{tpu_custom_call.1} parent=1 // pred_check
      _
    $region43: #{tpu_custom_call.1} parent=1 // pred_check_branch
      %98 = sbr.rel (0) target = $region45
    $region44: #{tpu_custom_call.1} parent=1 // pred_region
      %99 = dma.done [#allocation4], 128
    $region45: #{tpu_custom_call.1} parent=1 // pred_fallthru
      _
    // Predicated region
    $region46: #{tpu_custom_call.1} parent=1 // pred_check
      _
    $region47: #{tpu_custom_call.1} parent=1 // pred_check_branch
      %101 = sbr.rel (0) target = $region49
    $region48: #{tpu_custom_call.1} parent=1 // pred_region
      %102 = dma.done [#allocation7], 512
    $region49: #{tpu_custom_call.1} parent=1 // pred_fallthru
      _
    // Predicated region
    $region50: #{tpu_custom_call.1} parent=1 // pred_check
      _
    $region51: #{tpu_custom_call.1} parent=1 // pred_check_branch
      %104 = sbr.rel (0) target = $region53
    $region52: #{tpu_custom_call.1} parent=1 // pred_region
      %105 = dma.done [#allocation7], 256
    $region53: #{tpu_custom_call.1} parent=1 // pred_fallthru
      _
    // Predicated region
    $region54: #{tpu_custom_call.1} parent=1 // pred_check
      _
    $region55: #{tpu_custom_call.1} parent=1 // pred_check_branch
      %107 = sbr.rel (0) target = $region57
    $region56: #{tpu_custom_call.1} parent=1 // pred_region
      %108 = dma.done [#allocation10], 16384
    $region57: #{tpu_custom_call.1} parent=1 // pred_fallthru
      _
    // Predicated region
    $region58: #{tpu_custom_call.1} parent=1 // pred_check
      _
    $region59: #{tpu_custom_call.1} parent=1 // pred_check_branch
      %110 = sbr.rel (0) target = $region61
    $region60: #{tpu_custom_call.1} parent=1 // pred_region
      %111 = dma.done [#allocation10], 8192
    $region61: #{tpu_custom_call.1} parent=1 // pred_fallthru
      _
    // Predicated region
    $region62: #{tpu_custom_call.1} parent=1 // pred_check
      _
    $region63: #{tpu_custom_call.1} parent=1 // pred_check_branch
      %113 = sbr.rel (0) target = $region65
    $region64: #{tpu_custom_call.1} parent=1 // pred_region
      %114 = dma.done [#allocation13], 2048
    $region65: #{tpu_custom_call.1} parent=1 // pred_fallthru
      _
    %s116 = sld [smem:[#allocation2]]
    %v117 = vld [vmem:[#allocation3] sm:$0xff]
    %v118 = vpack.c.bf16 %v117, %v117
    %v119 = vld [vmem:[#allocation6] sm:$0xff]
    %v120 = vld [vmem:[#allocation6 + $0x8] sm:$0xff]
    %v121 = vld [vmem:[#allocation6 + $0x10] sm:$0xff]
    %v122 = vld [vmem:[#allocation6 + $0x18] sm:$0xff]
    %v123 = vld [vmem:[#allocation8] ss:$4 sm:$0xf]
    %s124 = scalar_lea.vmem [#allocation8], 1
    %v125 = vld [vmem:[%s124] ss:$4 sm:$0xf]
    %s126 = scalar_lea.vmem [#allocation8], 2
    %v127 = vld [vmem:[%s126] ss:$4 sm:$0xf]
    %v129 = vlaneseq
    %v130 = vshrl.u32 %v129, 7
    %v131 = vsub.s32 0, %v130
    %v132 = vrot.slane %v123, %v131
    %v133 = vlaneseq
    %v134 = vshrl.u32 %v133, 7
    %v135 = vsub.s32 1, %v134
    %v136 = vrot.slane %v123, %v135
    %v137 = vlaneseq
    %v138 = vshrl.u32 %v137, 7
    %v139 = vsub.s32 2, %v138
    %v140 = vrot.slane %v123, %v139
    %v141 = vlaneseq
    %v142 = vshrl.u32 %v141, 7
    %v143 = vsub.s32 3, %v142
    %v144 = vrot.slane %v123, %v143
    %v153 = vunpack.c.l.b16 %v119
    %v154 = vunpack.c.h.b16 %v119
    %v155 = vunpack.c.l.b16 %v120
    %v156 = vunpack.c.h.b16 %v120
    %v157 = vunpack.c.l.b16 %v121
    %v158 = vunpack.c.h.b16 %v121
    %v159 = vunpack.c.l.b16 %v122
    %v160 = vunpack.c.h.b16 %v122
    %v161 = vpack.c.b16 %v157, %v153
    %v162 = vpack.c.b16 %v158, %v154
    %v163 = vpack.c.b16 %v159, %v155
    %v164 = vpack.c.b16 %v160, %v156
    %vm169 = vcmask 130048
    %v171 = vsel %vm169, %v118, 0
    %173 = vmatprep.subr.bf16.mxu0 %v162
    %174 = vmatpush1.bf16.msra.mxu0 %v161
    %175 = vmatprep.subr.bf16.mxu0 0
    %176 = vmatpush1.bf16.msra.mxu0 0
    %177 = vmatprep.subr.bf16.mxu0 0
    %178 = vmatpush1.bf16.msra.mxu0 0
    %179 = vmatprep.subr.bf16.mxu0 0
    %180 = vmatpush1.bf16.msra.mxu0 0
    %181 = vmatprep.subr.bf16.mxu0 0
    %182 = vmatpush1.bf16.msra.mxu0 0
    %183 = vmatprep.subr.bf16.mxu0 0
    %184 = vmatpush1.bf16.msra.mxu0 0
    %185 = vmatprep.subr.bf16.mxu0 0
    %186 = vmatpush1.bf16.msra.mxu0 0
    %187 = vmatprep.subr.bf16.mxu0 0
    %188 = vmatpush1.bf16.msra.mxu0 0
    %189 = vmatprep.subr.bf16.mxu0 0
    %190 = vmatpush1.bf16.msra.mxu0 0
    %191 = vmatprep.subr.bf16.mxu0 0
    %192 = vmatpush1.bf16.msra.mxu0 0
    %193 = vmatprep.subr.bf16.mxu0 0
    %194 = vmatpush1.bf16.msra.mxu0 0
    %195 = vmatprep.subr.bf16.mxu0 0
    %196 = vmatpush1.bf16.msra.mxu0 0
    %197 = vmatprep.subr.bf16.mxu0 0
    %198 = vmatpush1.bf16.msra.mxu0 0
    %199 = vmatprep.subr.bf16.mxu0 0
    %200 = vmatpush1.bf16.msra.mxu0 0
    %201 = vmatprep.subr.bf16.mxu0 0
    %202 = vmatpush1.bf16.msra.mxu0 0
    %203 = vmatprep.subr.bf16.mxu0 0
    %204 = vmatpush1.bf16.msra.mxu0 0
    %205 = vmatprep.mubr.bf16.mxu0 0
    %206 = vmatmul.mubr.bf16.gmra.mrb[0].mxu0 %v171
    %v207 = vpop.f32.mrb[0].mxu0
    %v208 = vadd.f32 %v132, %v207
    %v209 = vpop.f32.mrb[0].mxu0
    %v210 = vadd.f32 %v136, %v209
    %v211 = vpop.f32.mrb[0].mxu0
    %v212 = vpop.f32.mrb[0].mxu0
    %213 = vdwg.mxu0
    %214 = vmatprep.subr.bf16.mxu0 %v164
    %215 = vmatpush1.bf16.msra.mxu0 %v163
    %216 = vmatprep.subr.bf16.mxu0 0
    %217 = vmatpush1.bf16.msra.mxu0 0
    %218 = vmatprep.subr.bf16.mxu0 0
    %219 = vmatpush1.bf16.msra.mxu0 0
    %220 = vmatprep.subr.bf16.mxu0 0
    %221 = vmatpush1.bf16.msra.mxu0 0
    %222 = vmatprep.subr.bf16.mxu0 0
    %223 = vmatpush1.bf16.msra.mxu0 0
    %224 = vmatprep.subr.bf16.mxu0 0
    %225 = vmatpush1.bf16.msra.mxu0 0
    %226 = vmatprep.subr.bf16.mxu0 0
    %227 = vmatpush1.bf16.msra.mxu0 0
    %228 = vmatprep.subr.bf16.mxu0 0
    %229 = vmatpush1.bf16.msra.mxu0 0
    %230 = vmatprep.subr.bf16.mxu0 0
    %231 = vmatpush1.bf16.msra.mxu0 0
    %232 = vmatprep.subr.bf16.mxu0 0
    %233 = vmatpush1.bf16.msra.mxu0 0
    %234 = vmatprep.subr.bf16.mxu0 0
    %235 = vmatpush1.bf16.msra.mxu0 0
    %236 = vmatprep.subr.bf16.mxu0 0
    %237 = vmatpush1.bf16.msra.mxu0 0
    %238 = vmatprep.subr.bf16.mxu0 0
    %239 = vmatpush1.bf16.msra.mxu0 0
    %240 = vmatprep.subr.bf16.mxu0 0
    %241 = vmatpush1.bf16.msra.mxu0 0
    %242 = vmatprep.subr.bf16.mxu0 0
    %243 = vmatpush1.bf16.msra.mxu0 0
    %244 = vmatprep.subr.bf16.mxu0 0
    %245 = vmatpush1.bf16.msra.mxu0 0
    %246 = vmatprep.mubr.bf16.mxu0 0
    %247 = vmatmul.mubr.bf16.gmra.mrb[0].mxu0 %v171
    %v248 = vpop.f32.mrb[0].mxu0
    %v249 = vadd.f32 %v140, %v248
    %v250 = vpop.f32.mrb[0].mxu0
    %v251 = vadd.f32 %v144, %v250
    %v252 = vpop.f32.mrb[0].mxu0
    %v253 = vpop.f32.mrb[0].mxu0
    %254 = vdwg.mxu0
    %v255 = vadd.f32 %v208, %v210
    %v256 = vadd.f32 %v255, %v249
    %v257 = vadd.f32 %v256, %v251
    %258 = vadd.xlane.f32.xlu0 %v257
    %v259 = vpop.xlane.xlu0 %258
    %v260 = vrcp.pop 512.0
    %v261 = vmul.f32 %v259, %v260
    %v262 = vmul.f32 %v208, %v208
    %v263 = vmul.f32 %v210, %v210
    %v264 = vmul.f32 %v249, %v249
    %v265 = vmul.f32 %v251, %v251
    %v266 = vadd.f32 %v262, %v263
    %v267 = vadd.f32 %v266, %v264
    %v268 = vadd.f32 %v267, %v265
    %269 = vadd.xlane.f32.xlu0 %v268
    %v270 = vpop.xlane.xlu0 %269
    %v271 = vmul.f32 %v270, %v260
    %v272 = vmul.f32 %v261, %v261
    %v273 = vsub.f32 %v271, %v272
    %v274 = vmax.f32 %v273, 0.0
    %v275 = vsub.f32 %v208, %v261
    %v276 = vsub.f32 %v210, %v261
    %v277 = vsub.f32 %v249, %v261
    %v278 = vsub.f32 %v251, %v261
    %v279 = vadd.f32 %v274, 1e-05
    %v280 = vrsqrt.pop %v279
    %v281 = vmul.f32 %v275, %v280
    %v282 = vmul.f32 %v276, %v280
    %v283 = vmul.f32 %v277, %v280
    %v284 = vmul.f32 %v278, %v280
    %v286 = vlaneseq
    %v287 = vshrl.u32 %v286, 7
    %v288 = vsub.s32 0, %v287
    %v289 = vrot.slane %v125, %v288
    %v290 = vlaneseq
    %v291 = vshrl.u32 %v290, 7
    %v292 = vsub.s32 1, %v291
    %v293 = vrot.slane %v125, %v292
    %v294 = vlaneseq
    %v295 = vshrl.u32 %v294, 7
    %v296 = vsub.s32 2, %v295
    %v297 = vrot.slane %v125, %v296
    %v298 = vlaneseq
    %v299 = vshrl.u32 %v298, 7
    %v300 = vsub.s32 3, %v299
    %v301 = vrot.slane %v125, %v300
    %v306 = vmul.f32 %v281, %v289
    %v307 = vmul.f32 %v282, %v293
    %v308 = vmul.f32 %v283, %v297
    %v309 = vmul.f32 %v284, %v301
    %v311 = vlaneseq
    %v312 = vshrl.u32 %v311, 7
    %v313 = vsub.s32 0, %v312
    %v314 = vrot.slane %v127, %v313
    %v315 = vlaneseq
    %v316 = vshrl.u32 %v315, 7
    %v317 = vsub.s32 1, %v316
    %v318 = vrot.slane %v127, %v317
    %v319 = vlaneseq
    %v320 = vshrl.u32 %v319, 7
    %v321 = vsub.s32 2, %v320
    %v322 = vrot.slane %v127, %v321
    %v323 = vlaneseq
    %v324 = vshrl.u32 %v323, 7
    %v325 = vsub.s32 3, %v324
    %v326 = vrot.slane %v127, %v325
    %v331 = vadd.f32 %v306, %v314
    %v332 = vadd.f32 %v307, %v318
    %v333 = vadd.f32 %v308, %v322
    %v334 = vadd.f32 %v309, %v326
    %v335 = vmax.f32 %v331, 0.0
    %v336 = vmax.f32 %v332, 0.0
    %v337 = vmax.f32 %v333, 0.0
    %v338 = vmax.f32 %v334, 0.0
    %v339 = vpack.c.bf16 %v335, %v335
    %v340 = vpack.c.bf16 %v336, %v336
    %v341 = vpack.c.bf16 %v337, %v337
    %v342 = vpack.c.bf16 %v338, %v338
    %v343 = vld [vmem:[#allocation9] sm:$0xff]
    %v344 = vld [vmem:[#allocation9 + $0x8] sm:$0xff]
    %v345 = vld [vmem:[#allocation9 + $0x10] sm:$0xff]
    %v346 = vld [vmem:[#allocation9 + $0x18] sm:$0xff]
    %v347 = vld [vmem:[#allocation9 + $0x20] sm:$0xff]
    %v348 = vld [vmem:[#allocation9 + $0x28] sm:$0xff]
    %v349 = vld [vmem:[#allocation9 + $0x30] sm:$0xff]
    %v350 = vld [vmem:[#allocation9 + $0x38] sm:$0xff]
    %v351 = vld [vmem:[#allocation9 + $0x40] sm:$0xff]
    %v352 = vld [vmem:[#allocation9 + $0x48] sm:$0xff]
    %v353 = vld [vmem:[#allocation9 + $0x50] sm:$0xff]
    %v354 = vld [vmem:[#allocation9 + $0x58] sm:$0xff]
    %v355 = vld [vmem:[#allocation9 + $0x60] sm:$0xff]
    %v356 = vld [vmem:[#allocation9 + $0x68] sm:$0xff]
    %v357 = vld [vmem:[#allocation9 + $0x70] sm:$0xff]
    %v358 = vld [vmem:[#allocation9 + $0x78] sm:$0xff]
    %v359 = vld [vmem:[#allocation9 + $0x80] sm:$0xff]
    %v360 = vld [vmem:[#allocation9 + $0x88] sm:$0xff]
    %v361 = vld [vmem:[#allocation9 + $0x90] sm:$0xff]
    %v362 = vld [vmem:[#allocation9 + $0x98] sm:$0xff]
    %v363 = vld [vmem:[#allocation9 + $0xa0] sm:$0xff]
    %v364 = vld [vmem:[#allocation9 + $0xa8] sm:$0xff]
    %v365 = vld [vmem:[#allocation9 + $0xb0] sm:$0xff]
    %v366 = vld [vmem:[#allocation9 + $0xb8] sm:$0xff]
    %v367 = vld [vmem:[#allocation9 + $0xc0] sm:$0xff]
    %v368 = vld [vmem:[#allocation9 + $0xc8] sm:$0xff]
    %v369 = vld [vmem:[#allocation9 + $0xd0] sm:$0xff]
    %v370 = vld [vmem:[#allocation9 + $0xd8] sm:$0xff]
    %v371 = vld [vmem:[#allocation9 + $0xe0] sm:$0xff]
    %v372 = vld [vmem:[#allocation9 + $0xe8] sm:$0xff]
    %v373 = vld [vmem:[#allocation9 + $0xf0] sm:$0xff]
    %v374 = vld [vmem:[#allocation9 + $0xf8] sm:$0xff]
    %v375 = vld [vmem:[#allocation9 + $0x100] sm:$0xff]
    %v376 = vld [vmem:[#allocation9 + $0x108] sm:$0xff]
    %v377 = vld [vmem:[#allocation9 + $0x110] sm:$0xff]
    %v378 = vld [vmem:[#allocation9 + $0x118] sm:$0xff]
    %v379 = vld [vmem:[#allocation9 + $0x120] sm:$0xff]
    %v380 = vld [vmem:[#allocation9 + $0x128] sm:$0xff]
    %v381 = vld [vmem:[#allocation9 + $0x130] sm:$0xff]
    %v382 = vld [vmem:[#allocation9 + $0x138] sm:$0xff]
    %v383 = vld [vmem:[#allocation9 + $0x140] sm:$0xff]
    %v384 = vld [vmem:[#allocation9 + $0x148] sm:$0xff]
    %v385 = vld [vmem:[#allocation9 + $0x150] sm:$0xff]
    %v386 = vld [vmem:[#allocation9 + $0x158] sm:$0xff]
    %v387 = vld [vmem:[#allocation9 + $0x160] sm:$0xff]
    %v388 = vld [vmem:[#allocation9 + $0x168] sm:$0xff]
    %v389 = vld [vmem:[#allocation9 + $0x170] sm:$0xff]
    %v390 = vld [vmem:[#allocation9 + $0x178] sm:$0xff]
    %v391 = vld [vmem:[#allocation9 + $0x180] sm:$0xff]
    %v392 = vld [vmem:[#allocation9 + $0x188] sm:$0xff]
    %v393 = vld [vmem:[#allocation9 + $0x190] sm:$0xff]
    %v394 = vld [vmem:[#allocation9 + $0x198] sm:$0xff]
    %v395 = vld [vmem:[#allocation9 + $0x1a0] sm:$0xff]
    %v396 = vld [vmem:[#allocation9 + $0x1a8] sm:$0xff]
    %v397 = vld [vmem:[#allocation9 + $0x1b0] sm:$0xff]
    %v398 = vld [vmem:[#allocation9 + $0x1b8] sm:$0xff]
    %v399 = vld [vmem:[#allocation9 + $0x1c0] sm:$0xff]
    %v400 = vld [vmem:[#allocation9 + $0x1c8] sm:$0xff]
    %v401 = vld [vmem:[#allocation9 + $0x1d0] sm:$0xff]
    %v402 = vld [vmem:[#allocation9 + $0x1d8] sm:$0xff]
    %v403 = vld [vmem:[#allocation9 + $0x1e0] sm:$0xff]
    %v404 = vld [vmem:[#allocation9 + $0x1e8] sm:$0xff]
    %v405 = vld [vmem:[#allocation9 + $0x1f0] sm:$0xff]
    %v406 = vld [vmem:[#allocation9 + $0x1f8] sm:$0xff]
    %v407 = vld [vmem:[#allocation9 + $0x200] sm:$0xff]
    %v408 = vld [vmem:[#allocation9 + $0x208] sm:$0xff]
    %v409 = vld [vmem:[#allocation9 + $0x210] sm:$0xff]
    %v410 = vld [vmem:[#allocation9 + $0x218] sm:$0xff]
    %v411 = vld [vmem:[#allocation9 + $0x220] sm:$0xff]
    %v412 = vld [vmem:[#allocation9 + $0x228] sm:$0xff]
    %v413 = vld [vmem:[#allocation9 + $0x230] sm:$0xff]
    %v414 = vld [vmem:[#allocation9 + $0x238] sm:$0xff]
    %v415 = vld [vmem:[#allocation9 + $0x240] sm:$0xff]
    %v416 = vld [vmem:[#allocation9 + $0x248] sm:$0xff]
    %v417 = vld [vmem:[#allocation9 + $0x250] sm:$0xff]
    %v418 = vld [vmem:[#allocation9 + $0x258] sm:$0xff]
    %v419 = vld [vmem:[#allocation9 + $0x260] sm:$0xff]
    %v420 = vld [vmem:[#allocation9 + $0x268] sm:$0xff]
    %v421 = vld [vmem:[#allocation9 + $0x270] sm:$0xff]
    %v422 = vld [vmem:[#allocation9 + $0x278] sm:$0xff]
    %v423 = vld [vmem:[#allocation9 + $0x280] sm:$0xff]
    %v424 = vld [vmem:[#allocation9 + $0x288] sm:$0xff]
    %v425 = vld [vmem:[#allocation9 + $0x290] sm:$0xff]
    %v426 = vld [vmem:[#allocation9 + $0x298] sm:$0xff]
    %v427 = vld [vmem:[#allocation9 + $0x2a0] sm:$0xff]
    %v428 = vld [vmem:[#allocation9 + $0x2a8] sm:$0xff]
    %v429 = vld [vmem:[#allocation9 + $0x2b0] sm:$0xff]
    %v430 = vld [vmem:[#allocation9 + $0x2b8] sm:$0xff]
    %v431 = vld [vmem:[#allocation9 + $0x2c0] sm:$0xff]
    %v432 = vld [vmem:[#allocation9 + $0x2c8] sm:$0xff]
    %v433 = vld [vmem:[#allocation9 + $0x2d0] sm:$0xff]
    %v434 = vld [vmem:[#allocation9 + $0x2d8] sm:$0xff]
    %v435 = vld [vmem:[#allocation9 + $0x2e0] sm:$0xff]
    %v436 = vld [vmem:[#allocation9 + $0x2e8] sm:$0xff]
    %v437 = vld [vmem:[#allocation9 + $0x2f0] sm:$0xff]
    %v438 = vld [vmem:[#allocation9 + $0x2f8] sm:$0xff]
    %v439 = vld [vmem:[#allocation9 + $0x300] sm:$0xff]
    %v440 = vld [vmem:[#allocation9 + $0x308] sm:$0xff]
    %v441 = vld [vmem:[#allocation9 + $0x310] sm:$0xff]
    %v442 = vld [vmem:[#allocation9 + $0x318] sm:$0xff]
    %v443 = vld [vmem:[#allocation9 + $0x320] sm:$0xff]
    %v444 = vld [vmem:[#allocation9 + $0x328] sm:$0xff]
    %v445 = vld [vmem:[#allocation9 + $0x330] sm:$0xff]
    %v446 = vld [vmem:[#allocation9 + $0x338] sm:$0xff]
    %v447 = vld [vmem:[#allocation9 + $0x340] sm:$0xff]
    %v448 = vld [vmem:[#allocation9 + $0x348] sm:$0xff]
    %v449 = vld [vmem:[#allocation9 + $0x350] sm:$0xff]
    %v450 = vld [vmem:[#allocation9 + $0x358] sm:$0xff]
    %v451 = vld [vmem:[#allocation9 + $0x360] sm:$0xff]
    %v452 = vld [vmem:[#allocation9 + $0x368] sm:$0xff]
    %v453 = vld [vmem:[#allocation9 + $0x370] sm:$0xff]
    %v454 = vld [vmem:[#allocation9 + $0x378] sm:$0xff]
    %v455 = vld [vmem:[#allocation9 + $0x380] sm:$0xff]
    %v456 = vld [vmem:[#allocation9 + $0x388] sm:$0xff]
    %v457 = vld [vmem:[#allocation9 + $0x390] sm:$0xff]
    %v458 = vld [vmem:[#allocation9 + $0x398] sm:$0xff]
    %v459 = vld [vmem:[#allocation9 + $0x3a0] sm:$0xff]
    %v460 = vld [vmem:[#allocation9 + $0x3a8] sm:$0xff]
    %v461 = vld [vmem:[#allocation9 + $0x3b0] sm:$0xff]
    %v462 = vld [vmem:[#allocation9 + $0x3b8] sm:$0xff]
    %v463 = vld [vmem:[#allocation9 + $0x3c0] sm:$0xff]
    %v464 = vld [vmem:[#allocation9 + $0x3c8] sm:$0xff]
    %v465 = vld [vmem:[#allocation9 + $0x3d0] sm:$0xff]
    %v466 = vld [vmem:[#allocation9 + $0x3d8] sm:$0xff]
    %v467 = vld [vmem:[#allocation9 + $0x3e0] sm:$0xff]
    %v468 = vld [vmem:[#allocation9 + $0x3e8] sm:$0xff]
    %v469 = vld [vmem:[#allocation9 + $0x3f0] sm:$0xff]
    %v470 = vld [vmem:[#allocation9 + $0x3f8] sm:$0xff]
    %v471 = vld [vmem:[%s5] ss:$4 sm:$0xf]
    %s472 = scalar_lea.vmem %s5, 1
    %v473 = vld [vmem:[%s472] ss:$4 sm:$0xf]
    %s474 = scalar_lea.vmem %s5, 2
    %v475 = vld [vmem:[%s474] ss:$4 sm:$0xf]
    %v477 = vlaneseq
    %v478 = vshrl.u32 %v477, 7
    %v479 = vsub.s32 0, %v478
    %v480 = vrot.slane %v471, %v479
    %v481 = vlaneseq
    %v482 = vshrl.u32 %v481, 7
    %v483 = vsub.s32 1, %v482
    %v484 = vrot.slane %v471, %v483
    %v485 = vlaneseq
    %v486 = vshrl.u32 %v485, 7
    %v487 = vsub.s32 2, %v486
    %v488 = vrot.slane %v471, %v487
    %v489 = vlaneseq
    %v490 = vshrl.u32 %v489, 7
    %v491 = vsub.s32 3, %v490
    %v492 = vrot.slane %v471, %v491
    %v625 = vunpack.c.l.b16 %v343
    %v626 = vunpack.c.h.b16 %v343
    %v627 = vunpack.c.l.b16 %v344
    %v628 = vunpack.c.h.b16 %v344
    %v629 = vunpack.c.l.b16 %v345
    %v630 = vunpack.c.h.b16 %v345
    %v631 = vunpack.c.l.b16 %v346
    %v632 = vunpack.c.h.b16 %v346
    %v633 = vunpack.c.l.b16 %v347
    %v634 = vunpack.c.h.b16 %v347
    %v635 = vunpack.c.l.b16 %v348
    %v636 = vunpack.c.h.b16 %v348
    %v637 = vunpack.c.l.b16 %v349
    %v638 = vunpack.c.h.b16 %v349
    %v639 = vunpack.c.l.b16 %v350
    %v640 = vunpack.c.h.b16 %v350
    %v641 = vunpack.c.l.b16 %v351
    %v642 = vunpack.c.h.b16 %v351
    %v643 = vunpack.c.l.b16 %v352
    %v644 = vunpack.c.h.b16 %v352
    %v645 = vunpack.c.l.b16 %v353
    %v646 = vunpack.c.h.b16 %v353
    %v647 = vunpack.c.l.b16 %v354
    %v648 = vunpack.c.h.b16 %v354
    %v649 = vunpack.c.l.b16 %v355
    %v650 = vunpack.c.h.b16 %v355
    %v651 = vunpack.c.l.b16 %v356
    %v652 = vunpack.c.h.b16 %v356
    %v653 = vunpack.c.l.b16 %v357
    %v654 = vunpack.c.h.b16 %v357
    %v655 = vunpack.c.l.b16 %v358
    %v656 = vunpack.c.h.b16 %v358
    %v657 = vunpack.c.l.b16 %v359
    %v658 = vunpack.c.h.b16 %v359
    %v659 = vunpack.c.l.b16 %v360
    %v660 = vunpack.c.h.b16 %v360
    %v661 = vunpack.c.l.b16 %v361
    %v662 = vunpack.c.h.b16 %v361
    %v663 = vunpack.c.l.b16 %v362
    %v664 = vunpack.c.h.b16 %v362
    %v665 = vunpack.c.l.b16 %v363
    %v666 = vunpack.c.h.b16 %v363
    %v667 = vunpack.c.l.b16 %v364
    %v668 = vunpack.c.h.b16 %v364
    %v669 = vunpack.c.l.b16 %v365
    %v670 = vunpack.c.h.b16 %v365
    %v671 = vunpack.c.l.b16 %v366
    %v672 = vunpack.c.h.b16 %v366
    %v673 = vunpack.c.l.b16 %v367
    %v674 = vunpack.c.h.b16 %v367
    %v675 = vunpack.c.l.b16 %v368
    %v676 = vunpack.c.h.b16 %v368
    %v677 = vunpack.c.l.b16 %v369
    %v678 = vunpack.c.h.b16 %v369
    %v679 = vunpack.c.l.b16 %v370
    %v680 = vunpack.c.h.b16 %v370
    %v681 = vunpack.c.l.b16 %v371
    %v682 = vunpack.c.h.b16 %v371
    %v683 = vunpack.c.l.b16 %v372
    %v684 = vunpack.c.h.b16 %v372
    %v685 = vunpack.c.l.b16 %v373
    %v686 = vunpack.c.h.b16 %v373
    %v687 = vunpack.c.l.b16 %v374
    %v688 = vunpack.c.h.b16 %v374
    %v689 = vunpack.c.l.b16 %v375
    %v690 = vunpack.c.h.b16 %v375
    %v691 = vunpack.c.l.b16 %v376
    %v692 = vunpack.c.h.b16 %v376
    %v693 = vunpack.c.l.b16 %v377
    %v694 = vunpack.c.h.b16 %v377
    %v695 = vunpack.c.l.b16 %v378
    %v696 = vunpack.c.h.b16 %v378
    %v697 = vunpack.c.l.b16 %v379
    %v698 = vunpack.c.h.b16 %v379
    %v699 = vunpack.c.l.b16 %v380
    %v700 = vunpack.c.h.b16 %v380
    %v701 = vunpack.c.l.b16 %v381
    %v702 = vunpack.c.h.b16 %v381
    %v703 = vunpack.c.l.b16 %v382
    %v704 = vunpack.c.h.b16 %v382
    %v705 = vunpack.c.l.b16 %v383
    %v706 = vunpack.c.h.b16 %v383
    %v707 = vunpack.c.l.b16 %v384
    %v708 = vunpack.c.h.b16 %v384
    %v709 = vunpack.c.l.b16 %v385
    %v710 = vunpack.c.h.b16 %v385
    %v711 = vunpack.c.l.b16 %v386
    %v712 = vunpack.c.h.b16 %v386
    %v713 = vunpack.c.l.b16 %v387
    %v714 = vunpack.c.h.b16 %v387
    %v715 = vunpack.c.l.b16 %v388
    %v716 = vunpack.c.h.b16 %v388
    %v717 = vunpack.c.l.b16 %v389
    %v718 = vunpack.c.h.b16 %v389
    %v719 = vunpack.c.l.b16 %v390
    %v720 = vunpack.c.h.b16 %v390
    %v721 = vunpack.c.l.b16 %v391
    %v722 = vunpack.c.h.b16 %v391
    %v723 = vunpack.c.l.b16 %v392
    %v724 = vunpack.c.h.b16 %v392
    %v725 = vunpack.c.l.b16 %v393
    %v726 = vunpack.c.h.b16 %v393
    %v727 = vunpack.c.l.b16 %v394
    %v728 = vunpack.c.h.b16 %v394
    %v729 = vunpack.c.l.b16 %v395
    %v730 = vunpack.c.h.b16 %v395
    %v731 = vunpack.c.l.b16 %v396
    %v732 = vunpack.c.h.b16 %v396
    %v733 = vunpack.c.l.b16 %v397
    %v734 = vunpack.c.h.b16 %v397
    %v735 = vunpack.c.l.b16 %v398
    %v736 = vunpack.c.h.b16 %v398
    %v737 = vunpack.c.l.b16 %v399
    %v738 = vunpack.c.h.b16 %v399
    %v739 = vunpack.c.l.b16 %v400
    %v740 = vunpack.c.h.b16 %v400
    %v741 = vunpack.c.l.b16 %v401
    %v742 = vunpack.c.h.b16 %v401
    %v743 = vunpack.c.l.b16 %v402
    %v744 = vunpack.c.h.b16 %v402
    %v745 = vunpack.c.l.b16 %v403
    %v746 = vunpack.c.h.b16 %v403
    %v747 = vunpack.c.l.b16 %v404
    %v748 = vunpack.c.h.b16 %v404
    %v749 = vunpack.c.l.b16 %v405
    %v750 = vunpack.c.h.b16 %v405
    %v751 = vunpack.c.l.b16 %v406
    %v752 = vunpack.c.h.b16 %v406
    %v753 = vunpack.c.l.b16 %v407
    %v754 = vunpack.c.h.b16 %v407
    %v755 = vunpack.c.l.b16 %v408
    %v756 = vunpack.c.h.b16 %v408
    %v757 = vunpack.c.l.b16 %v409
    %v758 = vunpack.c.h.b16 %v409
    %v759 = vunpack.c.l.b16 %v410
    %v760 = vunpack.c.h.b16 %v410
    %v761 = vunpack.c.l.b16 %v411
    %v762 = vunpack.c.h.b16 %v411
    %v763 = vunpack.c.l.b16 %v412
    %v764 = vunpack.c.h.b16 %v412
    %v765 = vunpack.c.l.b16 %v413
    %v766 = vunpack.c.h.b16 %v413
    %v767 = vunpack.c.l.b16 %v414
    %v768 = vunpack.c.h.b16 %v414
    %v769 = vunpack.c.l.b16 %v415
    %v770 = vunpack.c.h.b16 %v415
    %v771 = vunpack.c.l.b16 %v416
    %v772 = vunpack.c.h.b16 %v416
    %v773 = vunpack.c.l.b16 %v417
    %v774 = vunpack.c.h.b16 %v417
    %v775 = vunpack.c.l.b16 %v418
    %v776 = vunpack.c.h.b16 %v418
    %v777 = vunpack.c.l.b16 %v419
    %v778 = vunpack.c.h.b16 %v419
    %v779 = vunpack.c.l.b16 %v420
    %v780 = vunpack.c.h.b16 %v420
    %v781 = vunpack.c.l.b16 %v421
    %v782 = vunpack.c.h.b16 %v421
    %v783 = vunpack.c.l.b16 %v422
    %v784 = vunpack.c.h.b16 %v422
    %v785 = vunpack.c.l.b16 %v423
    %v786 = vunpack.c.h.b16 %v423
    %v787 = vunpack.c.l.b16 %v424
    %v788 = vunpack.c.h.b16 %v424
    %v789 = vunpack.c.l.b16 %v425
    %v790 = vunpack.c.h.b16 %v425
    %v791 = vunpack.c.l.b16 %v426
    %v792 = vunpack.c.h.b16 %v426
    %v793 = vunpack.c.l.b16 %v427
    %v794 = vunpack.c.h.b16 %v427
    %v795 = vunpack.c.l.b16 %v428
    %v796 = vunpack.c.h.b16 %v428
    %v797 = vunpack.c.l.b16 %v429
    %v798 = vunpack.c.h.b16 %v429
    %v799 = vunpack.c.l.b16 %v430
    %v800 = vunpack.c.h.b16 %v430
    %v801 = vunpack.c.l.b16 %v431
    %v802 = vunpack.c.h.b16 %v431
    %v803 = vunpack.c.l.b16 %v432
    %v804 = vunpack.c.h.b16 %v432
    %v805 = vunpack.c.l.b16 %v433
    %v806 = vunpack.c.h.b16 %v433
    %v807 = vunpack.c.l.b16 %v434
    %v808 = vunpack.c.h.b16 %v434
    %v809 = vunpack.c.l.b16 %v435
    %v810 = vunpack.c.h.b16 %v435
    %v811 = vunpack.c.l.b16 %v436
    %v812 = vunpack.c.h.b16 %v436
    %v813 = vunpack.c.l.b16 %v437
    %v814 = vunpack.c.h.b16 %v437
    %v815 = vunpack.c.l.b16 %v438
    %v816 = vunpack.c.h.b16 %v438
    %v817 = vunpack.c.l.b16 %v439
    %v818 = vunpack.c.h.b16 %v439
    %v819 = vunpack.c.l.b16 %v440
    %v820 = vunpack.c.h.b16 %v440
    %v821 = vunpack.c.l.b16 %v441
    %v822 = vunpack.c.h.b16 %v441
    %v823 = vunpack.c.l.b16 %v442
    %v824 = vunpack.c.h.b16 %v442
    %v825 = vunpack.c.l.b16 %v443
    %v826 = vunpack.c.h.b16 %v443
    %v827 = vunpack.c.l.b16 %v444
    %v828 = vunpack.c.h.b16 %v444
    %v829 = vunpack.c.l.b16 %v445
    %v830 = vunpack.c.h.b16 %v445
    %v831 = vunpack.c.l.b16 %v446
    %v832 = vunpack.c.h.b16 %v446
    %v833 = vunpack.c.l.b16 %v447
    %v834 = vunpack.c.h.b16 %v447
    %v835 = vunpack.c.l.b16 %v448
    %v836 = vunpack.c.h.b16 %v448
    %v837 = vunpack.c.l.b16 %v449
    %v838 = vunpack.c.h.b16 %v449
    %v839 = vunpack.c.l.b16 %v450
    %v840 = vunpack.c.h.b16 %v450
    %v841 = vunpack.c.l.b16 %v451
    %v842 = vunpack.c.h.b16 %v451
    %v843 = vunpack.c.l.b16 %v452
    %v844 = vunpack.c.h.b16 %v452
    %v845 = vunpack.c.l.b16 %v453
    %v846 = vunpack.c.h.b16 %v453
    %v847 = vunpack.c.l.b16 %v454
    %v848 = vunpack.c.h.b16 %v454
    %v849 = vunpack.c.l.b16 %v455
    %v850 = vunpack.c.h.b16 %v455
    %v851 = vunpack.c.l.b16 %v456
    %v852 = vunpack.c.h.b16 %v456
    %v853 = vunpack.c.l.b16 %v457
    %v854 = vunpack.c.h.b16 %v457
    %v855 = vunpack.c.l.b16 %v458
    %v856 = vunpack.c.h.b16 %v458
    %v857 = vunpack.c.l.b16 %v459
    %v858 = vunpack.c.h.b16 %v459
    %v859 = vunpack.c.l.b16 %v460
    %v860 = vunpack.c.h.b16 %v460
    %v861 = vunpack.c.l.b16 %v461
    %v862 = vunpack.c.h.b16 %v461
    %v863 = vunpack.c.l.b16 %v462
    %v864 = vunpack.c.h.b16 %v462
    %v865 = vunpack.c.l.b16 %v463
    %v866 = vunpack.c.h.b16 %v463
    %v867 = vunpack.c.l.b16 %v464
    %v868 = vunpack.c.h.b16 %v464
    %v869 = vunpack.c.l.b16 %v465
    %v870 = vunpack.c.h.b16 %v465
    %v871 = vunpack.c.l.b16 %v466
    %v872 = vunpack.c.h.b16 %v466
    %v873 = vunpack.c.l.b16 %v467
    %v874 = vunpack.c.h.b16 %v467
    %v875 = vunpack.c.l.b16 %v468
    %v876 = vunpack.c.h.b16 %v468
    %v877 = vunpack.c.l.b16 %v469
    %v878 = vunpack.c.h.b16 %v469
    %v879 = vunpack.c.l.b16 %v470
    %v880 = vunpack.c.h.b16 %v470
    %v881 = vpack.c.b16 %v629, %v625
    %v882 = vpack.c.b16 %v630, %v626
    %v883 = vpack.c.b16 %v631, %v627
    %v884 = vpack.c.b16 %v632, %v628
    %v885 = vpack.c.b16 %v637, %v633
    %v886 = vpack.c.b16 %v638, %v634
    %v887 = vpack.c.b16 %v639, %v635
    %v888 = vpack.c.b16 %v640, %v636
    %v889 = vpack.c.b16 %v645, %v641
    %v890 = vpack.c.b16 %v646, %v642
    %v891 = vpack.c.b16 %v647, %v643
    %v892 = vpack.c.b16 %v648, %v644
    %v893 = vpack.c.b16 %v653, %v649
    %v894 = vpack.c.b16 %v654, %v650
    %v895 = vpack.c.b16 %v655, %v651
    %v896 = vpack.c.b16 %v656, %v652
    %v897 = vpack.c.b16 %v661, %v657
    %v898 = vpack.c.b16 %v662, %v658
    %v899 = vpack.c.b16 %v663, %v659
    %v900 = vpack.c.b16 %v664, %v660
    %v901 = vpack.c.b16 %v669, %v665
    %v902 = vpack.c.b16 %v670, %v666
    %v903 = vpack.c.b16 %v671, %v667
    %v904 = vpack.c.b16 %v672, %v668
    %v905 = vpack.c.b16 %v677, %v673
    %v906 = vpack.c.b16 %v678, %v674
    %v907 = vpack.c.b16 %v679, %v675
    %v908 = vpack.c.b16 %v680, %v676
    %v909 = vpack.c.b16 %v685, %v681
    %v910 = vpack.c.b16 %v686, %v682
    %v911 = vpack.c.b16 %v687, %v683
    %v912 = vpack.c.b16 %v688, %v684
    %v913 = vpack.c.b16 %v693, %v689
    %v914 = vpack.c.b16 %v694, %v690
    %v915 = vpack.c.b16 %v695, %v691
    %v916 = vpack.c.b16 %v696, %v692
    %v917 = vpack.c.b16 %v701, %v697
    %v918 = vpack.c.b16 %v702, %v698
    %v919 = vpack.c.b16 %v703, %v699
    %v920 = vpack.c.b16 %v704, %v700
    %v921 = vpack.c.b16 %v709, %v705
    %v922 = vpack.c.b16 %v710, %v706
    %v923 = vpack.c.b16 %v711, %v707
    %v924 = vpack.c.b16 %v712, %v708
    %v925 = vpack.c.b16 %v717, %v713
    %v926 = vpack.c.b16 %v718, %v714
    %v927 = vpack.c.b16 %v719, %v715
    %v928 = vpack.c.b16 %v720, %v716
    %v929 = vpack.c.b16 %v725, %v721
    %v930 = vpack.c.b16 %v726, %v722
    %v931 = vpack.c.b16 %v727, %v723
    %v932 = vpack.c.b16 %v728, %v724
    %v933 = vpack.c.b16 %v733, %v729
    %v934 = vpack.c.b16 %v734, %v730
    %v935 = vpack.c.b16 %v735, %v731
    %v936 = vpack.c.b16 %v736, %v732
    %v937 = vpack.c.b16 %v741, %v737
    %v938 = vpack.c.b16 %v742, %v738
    %v939 = vpack.c.b16 %v743, %v739
    %v940 = vpack.c.b16 %v744, %v740
    %v941 = vpack.c.b16 %v749, %v745
    %v942 = vpack.c.b16 %v750, %v746
    %v943 = vpack.c.b16 %v751, %v747
    %v944 = vpack.c.b16 %v752, %v748
    %v945 = vpack.c.b16 %v757, %v753
    %v946 = vpack.c.b16 %v758, %v754
    %v947 = vpack.c.b16 %v759, %v755
    %v948 = vpack.c.b16 %v760, %v756
    %v949 = vpack.c.b16 %v765, %v761
    %v950 = vpack.c.b16 %v766, %v762
    %v951 = vpack.c.b16 %v767, %v763
    %v952 = vpack.c.b16 %v768, %v764
    %v953 = vpack.c.b16 %v773, %v769
    %v954 = vpack.c.b16 %v774, %v770
    %v955 = vpack.c.b16 %v775, %v771
    %v956 = vpack.c.b16 %v776, %v772
    %v957 = vpack.c.b16 %v781, %v777
    %v958 = vpack.c.b16 %v782, %v778
    %v959 = vpack.c.b16 %v783, %v779
    %v960 = vpack.c.b16 %v784, %v780
    %v961 = vpack.c.b16 %v789, %v785
    %v962 = vpack.c.b16 %v790, %v786
    %v963 = vpack.c.b16 %v791, %v787
    %v964 = vpack.c.b16 %v792, %v788
    %v965 = vpack.c.b16 %v797, %v793
    %v966 = vpack.c.b16 %v798, %v794
    %v967 = vpack.c.b16 %v799, %v795
    %v968 = vpack.c.b16 %v800, %v796
    %v969 = vpack.c.b16 %v805, %v801
    %v970 = vpack.c.b16 %v806, %v802
    %v971 = vpack.c.b16 %v807, %v803
    %v972 = vpack.c.b16 %v808, %v804
    %v973 = vpack.c.b16 %v813, %v809
    %v974 = vpack.c.b16 %v814, %v810
    %v975 = vpack.c.b16 %v815, %v811
    %v976 = vpack.c.b16 %v816, %v812
    %v977 = vpack.c.b16 %v821, %v817
    %v978 = vpack.c.b16 %v822, %v818
    %v979 = vpack.c.b16 %v823, %v819
    %v980 = vpack.c.b16 %v824, %v820
    %v981 = vpack.c.b16 %v829, %v825
    %v982 = vpack.c.b16 %v830, %v826
    %v983 = vpack.c.b16 %v831, %v827
    %v984 = vpack.c.b16 %v832, %v828
    %v985 = vpack.c.b16 %v837, %v833
    %v986 = vpack.c.b16 %v838, %v834
    %v987 = vpack.c.b16 %v839, %v835
    %v988 = vpack.c.b16 %v840, %v836
    %v989 = vpack.c.b16 %v845, %v841
    %v990 = vpack.c.b16 %v846, %v842
    %v991 = vpack.c.b16 %v847, %v843
    %v992 = vpack.c.b16 %v848, %v844
    %v993 = vpack.c.b16 %v853, %v849
    %v994 = vpack.c.b16 %v854, %v850
    %v995 = vpack.c.b16 %v855, %v851
    %v996 = vpack.c.b16 %v856, %v852
    %v997 = vpack.c.b16 %v861, %v857
    %v998 = vpack.c.b16 %v862, %v858
    %v999 = vpack.c.b16 %v863, %v859
    %v1000 = vpack.c.b16 %v864, %v860
    %v1001 = vpack.c.b16 %v869, %v865
    %v1002 = vpack.c.b16 %v870, %v866
    %v1003 = vpack.c.b16 %v871, %v867
    %v1004 = vpack.c.b16 %v872, %v868
    %v1005 = vpack.c.b16 %v877, %v873
    %v1006 = vpack.c.b16 %v878, %v874
    %v1007 = vpack.c.b16 %v879, %v875
    %v1008 = vpack.c.b16 %v880, %v876
    %1137 = vmatprep.subr.bf16.mxu0 %v882
    %1138 = vmatpush1.bf16.msra.mxu0 %v881
    %1139 = vmatprep.subr.bf16.mxu0 %v886
    %1140 = vmatpush1.bf16.msra.mxu0 %v885
    %1141 = vmatprep.subr.bf16.mxu0 %v890
    %1142 = vmatpush1.bf16.msra.mxu0 %v889
    %1143 = vmatprep.subr.bf16.mxu0 %v894
    %1144 = vmatpush1.bf16.msra.mxu0 %v893
    %1145 = vmatprep.subr.bf16.mxu0 %v898
    %1146 = vmatpush1.bf16.msra.mxu0 %v897
    %1147 = vmatprep.subr.bf16.mxu0 %v902
    %1148 = vmatpush1.bf16.msra.mxu0 %v901
    %1149 = vmatprep.subr.bf16.mxu0 %v906
    %1150 = vmatpush1.bf16.msra.mxu0 %v905
    %1151 = vmatprep.subr.bf16.mxu0 %v910
    %1152 = vmatpush1.bf16.msra.mxu0 %v909
    %1153 = vmatprep.subr.bf16.mxu0 %v914
    %1154 = vmatpush1.bf16.msra.mxu0 %v913
    %1155 = vmatprep.subr.bf16.mxu0 %v918
    %1156 = vmatpush1.bf16.msra.mxu0 %v917
    %1157 = vmatprep.subr.bf16.mxu0 %v922
    %1158 = vmatpush1.bf16.msra.mxu0 %v921
    %1159 = vmatprep.subr.bf16.mxu0 %v926
    %1160 = vmatpush1.bf16.msra.mxu0 %v925
    %1161 = vmatprep.subr.bf16.mxu0 %v930
    %1162 = vmatpush1.bf16.msra.mxu0 %v929
    %1163 = vmatprep.subr.bf16.mxu0 %v934
    %1164 = vmatpush1.bf16.msra.mxu0 %v933
    %1165 = vmatprep.subr.bf16.mxu0 %v938
    %1166 = vmatpush1.bf16.msra.mxu0 %v937
    %1167 = vmatprep.subr.bf16.mxu0 %v942
    %1168 = vmatpush1.bf16.msra.mxu0 %v941
    %1169 = vmatprep.mubr.bf16.mxu0 %v340
    %1170 = vmatmul.mubr.bf16.gmra.mrb[0].mxu0 %v339
    %v1171 = vpop.f32.mrb[0].mxu0
    %v1172 = vadd.f32 %v480, %v1171
    %v1173 = vpop.f32.mrb[0].mxu0
    %v1174 = vadd.f32 %v484, %v1173
    %v1175 = vpop.f32.mrb[0].mxu0
    %v1176 = vpop.f32.mrb[0].mxu0
    %1177 = vdwg.mxu0
    %1178 = vmatprep.subr.bf16.mxu0 %v946
    %1179 = vmatpush1.bf16.msra.mxu0 %v945
    %1180 = vmatprep.subr.bf16.mxu0 %v950
    %1181 = vmatpush1.bf16.msra.mxu0 %v949
    %1182 = vmatprep.subr.bf16.mxu0 %v954
    %1183 = vmatpush1.bf16.msra.mxu0 %v953
    %1184 = vmatprep.subr.bf16.mxu0 %v958
    %1185 = vmatpush1.bf16.msra.mxu0 %v957
    %1186 = vmatprep.subr.bf16.mxu0 %v962
    %1187 = vmatpush1.bf16.msra.mxu0 %v961
    %1188 = vmatprep.subr.bf16.mxu0 %v966
    %1189 = vmatpush1.bf16.msra.mxu0 %v965
    %1190 = vmatprep.subr.bf16.mxu0 %v970
    %1191 = vmatpush1.bf16.msra.mxu0 %v969
    %1192 = vmatprep.subr.bf16.mxu0 %v974
    %1193 = vmatpush1.bf16.msra.mxu0 %v973
    %1194 = vmatprep.subr.bf16.mxu0 %v978
    %1195 = vmatpush1.bf16.msra.mxu0 %v977
    %1196 = vmatprep.subr.bf16.mxu0 %v982
    %1197 = vmatpush1.bf16.msra.mxu0 %v981
    %1198 = vmatprep.subr.bf16.mxu0 %v986
    %1199 = vmatpush1.bf16.msra.mxu0 %v985
    %1200 = vmatprep.subr.bf16.mxu0 %v990
    %1201 = vmatpush1.bf16.msra.mxu0 %v989
    %1202 = vmatprep.subr.bf16.mxu0 %v994
    %1203 = vmatpush1.bf16.msra.mxu0 %v993
    %1204 = vmatprep.subr.bf16.mxu0 %v998
    %1205 = vmatpush1.bf16.msra.mxu0 %v997
    %1206 = vmatprep.subr.bf16.mxu0 %v1002
    %1207 = vmatpush1.bf16.msra.mxu0 %v1001
    %1208 = vmatprep.subr.bf16.mxu0 %v1006
    %1209 = vmatpush1.bf16.msra.mxu0 %v1005
    %1210 = vmatprep.mubr.bf16.mxu0 %v342
    %1211 = vmatmul.mubr.bf16.gmra.mrb[0].mxu0 %v341
    %v1212 = vpop.f32.mrb[0].mxu0
    %v1213 = vadd.f32 %v1172, %v1212
    %v1214 = vpop.f32.mrb[0].mxu0
    %v1215 = vadd.f32 %v1174, %v1214
    %v1216 = vpop.f32.mrb[0].mxu0
    %v1217 = vpop.f32.mrb[0].mxu0
    %1218 = vdwg.mxu0
    %1219 = vmatprep.subr.bf16.mxu0 %v884
    %1220 = vmatpush1.bf16.msra.mxu0 %v883
    %1221 = vmatprep.subr.bf16.mxu0 %v888
    %1222 = vmatpush1.bf16.msra.mxu0 %v887
    %1223 = vmatprep.subr.bf16.mxu0 %v892
    %1224 = vmatpush1.bf16.msra.mxu0 %v891
    %1225 = vmatprep.subr.bf16.mxu0 %v896
    %1226 = vmatpush1.bf16.msra.mxu0 %v895
    %1227 = vmatprep.subr.bf16.mxu0 %v900
    %1228 = vmatpush1.bf16.msra.mxu0 %v899
    %1229 = vmatprep.subr.bf16.mxu0 %v904
    %1230 = vmatpush1.bf16.msra.mxu0 %v903
    %1231 = vmatprep.subr.bf16.mxu0 %v908
    %1232 = vmatpush1.bf16.msra.mxu0 %v907
    %1233 = vmatprep.subr.bf16.mxu0 %v912
    %1234 = vmatpush1.bf16.msra.mxu0 %v911
    %1235 = vmatprep.subr.bf16.mxu0 %v916
    %1236 = vmatpush1.bf16.msra.mxu0 %v915
    %1237 = vmatprep.subr.bf16.mxu0 %v920
    %1238 = vmatpush1.bf16.msra.mxu0 %v919
    %1239 = vmatprep.subr.bf16.mxu0 %v924
    %1240 = vmatpush1.bf16.msra.mxu0 %v923
    %1241 = vmatprep.subr.bf16.mxu0 %v928
    %1242 = vmatpush1.bf16.msra.mxu0 %v927
    %1243 = vmatprep.subr.bf16.mxu0 %v932
    %1244 = vmatpush1.bf16.msra.mxu0 %v931
    %1245 = vmatprep.subr.bf16.mxu0 %v936
    %1246 = vmatpush1.bf16.msra.mxu0 %v935
    %1247 = vmatprep.subr.bf16.mxu0 %v940
    %1248 = vmatpush1.bf16.msra.mxu0 %v939
    %1249 = vmatprep.subr.bf16.mxu0 %v944
    %1250 = vmatpush1.bf16.msra.mxu0 %v943
    %1251 = vmatprep.mubr.bf16.mxu0 %v340
    %1252 = vmatmul.mubr.bf16.gmra.mrb[0].mxu0 %v339
    %v1253 = vpop.f32.mrb[0].mxu0
    %v1254 = vadd.f32 %v488, %v1253
    %v1255 = vpop.f32.mrb[0].mxu0
    %v1256 = vadd.f32 %v492, %v1255
    %v1257 = vpop.f32.mrb[0].mxu0
    %v1258 = vpop.f32.mrb[0].mxu0
    %1259 = vdwg.mxu0
    %1260 = vmatprep.subr.bf16.mxu0 %v948
    %1261 = vmatpush1.bf16.msra.mxu0 %v947
    %1262 = vmatprep.subr.bf16.mxu0 %v952
    %1263 = vmatpush1.bf16.msra.mxu0 %v951
    %1264 = vmatprep.subr.bf16.mxu0 %v956
    %1265 = vmatpush1.bf16.msra.mxu0 %v955
    %1266 = vmatprep.subr.bf16.mxu0 %v960
    %1267 = vmatpush1.bf16.msra.mxu0 %v959
    %1268 = vmatprep.subr.bf16.mxu0 %v964
    %1269 = vmatpush1.bf16.msra.mxu0 %v963
    %1270 = vmatprep.subr.bf16.mxu0 %v968
    %1271 = vmatpush1.bf16.msra.mxu0 %v967
    %1272 = vmatprep.subr.bf16.mxu0 %v972
    %1273 = vmatpush1.bf16.msra.mxu0 %v971
    %1274 = vmatprep.subr.bf16.mxu0 %v976
    %1275 = vmatpush1.bf16.msra.mxu0 %v975
    %1276 = vmatprep.subr.bf16.mxu0 %v980
    %1277 = vmatpush1.bf16.msra.mxu0 %v979
    %1278 = vmatprep.subr.bf16.mxu0 %v984
    %1279 = vmatpush1.bf16.msra.mxu0 %v983
    %1280 = vmatprep.subr.bf16.mxu0 %v988
    %1281 = vmatpush1.bf16.msra.mxu0 %v987
    %1282 = vmatprep.subr.bf16.mxu0 %v992
    %1283 = vmatpush1.bf16.msra.mxu0 %v991
    %1284 = vmatprep.subr.bf16.mxu0 %v996
    %1285 = vmatpush1.bf16.msra.mxu0 %v995
    %1286 = vmatprep.subr.bf16.mxu0 %v1000
    %1287 = vmatpush1.bf16.msra.mxu0 %v999
    %1288 = vmatprep.subr.bf16.mxu0 %v1004
    %1289 = vmatpush1.bf16.msra.mxu0 %v1003
    %1290 = vmatprep.subr.bf16.mxu0 %v1008
    %1291 = vmatpush1.bf16.msra.mxu0 %v1007
    %1292 = vmatprep.mubr.bf16.mxu0 %v342
    %1293 = vmatmul.mubr.bf16.gmra.mrb[0].mxu0 %v341
    %v1294 = vpop.f32.mrb[0].mxu0
    %v1295 = vadd.f32 %v1254, %v1294
    %v1296 = vpop.f32.mrb[0].mxu0
    %v1297 = vadd.f32 %v1256, %v1296
    %v1298 = vpop.f32.mrb[0].mxu0
    %v1299 = vpop.f32.mrb[0].mxu0
    %1300 = vdwg.mxu0
    %v1301 = vadd.f32 %v1213, %v1215
    %v1302 = vadd.f32 %v1301, %v1295
    %v1303 = vadd.f32 %v1302, %v1297
    %1304 = vadd.xlane.f32.xlu0 %v1303
    %v1305 = vpop.xlane.xlu0 %1304
    %v1306 = vmul.f32 %v1305, %v260
    %v1307 = vmul.f32 %v1213, %v1213
    %v1308 = vmul.f32 %v1215, %v1215
    %v1309 = vmul.f32 %v1295, %v1295
    %v1310 = vmul.f32 %v1297, %v1297
    %v1311 = vadd.f32 %v1307, %v1308
    %v1312 = vadd.f32 %v1311, %v1309
    %v1313 = vadd.f32 %v1312, %v1310
    %1314 = vadd.xlane.f32.xlu0 %v1313
    %v1315 = vpop.xlane.xlu0 %1314
    %v1316 = vmul.f32 %v1315, %v260
    %v1317 = vmul.f32 %v1306, %v1306
    %v1318 = vsub.f32 %v1316, %v1317
    %v1319 = vmax.f32 %v1318, 0.0
    %v1320 = vsub.f32 %v1213, %v1306
    %v1321 = vsub.f32 %v1215, %v1306
    %v1322 = vsub.f32 %v1295, %v1306
    %v1323 = vsub.f32 %v1297, %v1306
    %v1324 = vadd.f32 %v1319, 1e-05
    %v1325 = vrsqrt.pop %v1324
    %v1326 = vmul.f32 %v1320, %v1325
    %v1327 = vmul.f32 %v1321, %v1325
    %v1328 = vmul.f32 %v1322, %v1325
    %v1329 = vmul.f32 %v1323, %v1325
    %v1331 = vlaneseq
    %v1332 = vshrl.u32 %v1331, 7
    %v1333 = vsub.s32 0, %v1332
    %v1334 = vrot.slane %v473, %v1333
    %v1335 = vlaneseq
    %v1336 = vshrl.u32 %v1335, 7
    %v1337 = vsub.s32 1, %v1336
    %v1338 = vrot.slane %v473, %v1337
    %v1339 = vlaneseq
    %v1340 = vshrl.u32 %v1339, 7
    %v1341 = vsub.s32 2, %v1340
    %v1342 = vrot.slane %v473, %v1341
    %v1343 = vlaneseq
    %v1344 = vshrl.u32 %v1343, 7
    %v1345 = vsub.s32 3, %v1344
    %v1346 = vrot.slane %v473, %v1345
    %v1351 = vmul.f32 %v1326, %v1334
    %v1352 = vmul.f32 %v1327, %v1338
    %v1353 = vmul.f32 %v1328, %v1342
    %v1354 = vmul.f32 %v1329, %v1346
    %v1356 = vlaneseq
    %v1357 = vshrl.u32 %v1356, 7
    %v1358 = vsub.s32 0, %v1357
    %v1359 = vrot.slane %v475, %v1358
    %v1360 = vlaneseq
    %v1361 = vshrl.u32 %v1360, 7
    %v1362 = vsub.s32 1, %v1361
    %v1363 = vrot.slane %v475, %v1362
    %v1364 = vlaneseq
    %v1365 = vshrl.u32 %v1364, 7
    %v1366 = vsub.s32 2, %v1365
    %v1367 = vrot.slane %v475, %v1366
    %v1368 = vlaneseq
    %v1369 = vshrl.u32 %v1368, 7
    %v1370 = vsub.s32 3, %v1369
    %v1371 = vrot.slane %v475, %v1370
    %v1376 = vadd.f32 %v1351, %v1359
    %v1377 = vadd.f32 %v1352, %v1363
    %v1378 = vadd.f32 %v1353, %v1367
    %v1379 = vadd.f32 %v1354, %v1371
    %v1380 = vmax.f32 %v1376, 0.0
    %v1381 = vmax.f32 %v1377, 0.0
    %v1382 = vmax.f32 %v1378, 0.0
    %v1383 = vmax.f32 %v1379, 0.0
    %v1384 = vpack.c.bf16 %v1380, %v1380
    %v1385 = vpack.c.bf16 %v1381, %v1381
    %v1386 = vpack.c.bf16 %v1382, %v1382
    %v1387 = vpack.c.bf16 %v1383, %v1383
    %v1388 = vld [vmem:[#allocation11] sm:$0xff]
    %v1389 = vld [vmem:[#allocation11 + $0x8] sm:$0xff]
    %v1390 = vld [vmem:[#allocation11 + $0x10] sm:$0xff]
    %v1391 = vld [vmem:[#allocation11 + $0x18] sm:$0xff]
    %v1392 = vld [vmem:[#allocation11 + $0x20] sm:$0xff]
    %v1393 = vld [vmem:[#allocation11 + $0x28] sm:$0xff]
    %v1394 = vld [vmem:[#allocation11 + $0x30] sm:$0xff]
    %v1395 = vld [vmem:[#allocation11 + $0x38] sm:$0xff]
    %v1396 = vld [vmem:[#allocation11 + $0x40] sm:$0xff]
    %v1397 = vld [vmem:[#allocation11 + $0x48] sm:$0xff]
    %v1398 = vld [vmem:[#allocation11 + $0x50] sm:$0xff]
    %v1399 = vld [vmem:[#allocation11 + $0x58] sm:$0xff]
    %v1400 = vld [vmem:[#allocation11 + $0x60] sm:$0xff]
    %v1401 = vld [vmem:[#allocation11 + $0x68] sm:$0xff]
    %v1402 = vld [vmem:[#allocation11 + $0x70] sm:$0xff]
    %v1403 = vld [vmem:[#allocation11 + $0x78] sm:$0xff]
    %v1404 = vld [vmem:[#allocation11 + $0x80] sm:$0xff]
    %v1405 = vld [vmem:[#allocation11 + $0x88] sm:$0xff]
    %v1406 = vld [vmem:[#allocation11 + $0x90] sm:$0xff]
    %v1407 = vld [vmem:[#allocation11 + $0x98] sm:$0xff]
    %v1408 = vld [vmem:[#allocation11 + $0xa0] sm:$0xff]
    %v1409 = vld [vmem:[#allocation11 + $0xa8] sm:$0xff]
    %v1410 = vld [vmem:[#allocation11 + $0xb0] sm:$0xff]
    %v1411 = vld [vmem:[#allocation11 + $0xb8] sm:$0xff]
    %v1412 = vld [vmem:[#allocation11 + $0xc0] sm:$0xff]
    %v1413 = vld [vmem:[#allocation11 + $0xc8] sm:$0xff]
    %v1414 = vld [vmem:[#allocation11 + $0xd0] sm:$0xff]
    %v1415 = vld [vmem:[#allocation11 + $0xd8] sm:$0xff]
    %v1416 = vld [vmem:[#allocation11 + $0xe0] sm:$0xff]
    %v1417 = vld [vmem:[#allocation11 + $0xe8] sm:$0xff]
    %v1418 = vld [vmem:[#allocation11 + $0xf0] sm:$0xff]
    %v1419 = vld [vmem:[#allocation11 + $0xf8] sm:$0xff]
    %v1420 = vld [vmem:[#allocation11 + $0x100] sm:$0xff]
    %v1421 = vld [vmem:[#allocation11 + $0x108] sm:$0xff]
    %v1422 = vld [vmem:[#allocation11 + $0x110] sm:$0xff]
    %v1423 = vld [vmem:[#allocation11 + $0x118] sm:$0xff]
    %v1424 = vld [vmem:[#allocation11 + $0x120] sm:$0xff]
    %v1425 = vld [vmem:[#allocation11 + $0x128] sm:$0xff]
    %v1426 = vld [vmem:[#allocation11 + $0x130] sm:$0xff]
    %v1427 = vld [vmem:[#allocation11 + $0x138] sm:$0xff]
    %v1428 = vld [vmem:[#allocation11 + $0x140] sm:$0xff]
    %v1429 = vld [vmem:[#allocation11 + $0x148] sm:$0xff]
    %v1430 = vld [vmem:[#allocation11 + $0x150] sm:$0xff]
    %v1431 = vld [vmem:[#allocation11 + $0x158] sm:$0xff]
    %v1432 = vld [vmem:[#allocation11 + $0x160] sm:$0xff]
    %v1433 = vld [vmem:[#allocation11 + $0x168] sm:$0xff]
    %v1434 = vld [vmem:[#allocation11 + $0x170] sm:$0xff]
    %v1435 = vld [vmem:[#allocation11 + $0x178] sm:$0xff]
    %v1436 = vld [vmem:[#allocation11 + $0x180] sm:$0xff]
    %v1437 = vld [vmem:[#allocation11 + $0x188] sm:$0xff]
    %v1438 = vld [vmem:[#allocation11 + $0x190] sm:$0xff]
    %v1439 = vld [vmem:[#allocation11 + $0x198] sm:$0xff]
    %v1440 = vld [vmem:[#allocation11 + $0x1a0] sm:$0xff]
    %v1441 = vld [vmem:[#allocation11 + $0x1a8] sm:$0xff]
    %v1442 = vld [vmem:[#allocation11 + $0x1b0] sm:$0xff]
    %v1443 = vld [vmem:[#allocation11 + $0x1b8] sm:$0xff]
    %v1444 = vld [vmem:[#allocation11 + $0x1c0] sm:$0xff]
    %v1445 = vld [vmem:[#allocation11 + $0x1c8] sm:$0xff]
    %v1446 = vld [vmem:[#allocation11 + $0x1d0] sm:$0xff]
    %v1447 = vld [vmem:[#allocation11 + $0x1d8] sm:$0xff]
    %v1448 = vld [vmem:[#allocation11 + $0x1e0] sm:$0xff]
    %v1449 = vld [vmem:[#allocation11 + $0x1e8] sm:$0xff]
    %v1450 = vld [vmem:[#allocation11 + $0x1f0] sm:$0xff]
    %v1451 = vld [vmem:[#allocation11 + $0x1f8] sm:$0xff]
    %v1452 = vld [vmem:[%s7] ss:$4 sm:$0x3]
    %s1453 = scalar_lea.vmem %s7, 1
    %v1454 = vld [vmem:[%s1453] ss:$4 sm:$0x3]
    %s1455 = scalar_lea.vmem %s7, 2
    %v1456 = vld [vmem:[%s1455] ss:$4 sm:$0x3]
    %v1458 = vlaneseq
    %v1459 = vshrl.u32 %v1458, 7
    %v1460 = vsub.s32 0, %v1459
    %v1461 = vrot.slane %v1452, %v1460
    %v1462 = vlaneseq
    %v1463 = vshrl.u32 %v1462, 7
    %v1464 = vsub.s32 1, %v1463
    %v1465 = vrot.slane %v1452, %v1464
    %v1532 = vunpack.c.l.b16 %v1388
    %v1533 = vunpack.c.h.b16 %v1388
    %v1534 = vunpack.c.l.b16 %v1389
    %v1535 = vunpack.c.h.b16 %v1389
    %v1536 = vunpack.c.l.b16 %v1390
    %v1537 = vunpack.c.h.b16 %v1390
    %v1538 = vunpack.c.l.b16 %v1391
    %v1539 = vunpack.c.h.b16 %v1391
    %v1540 = vunpack.c.l.b16 %v1392
    %v1541 = vunpack.c.h.b16 %v1392
    %v1542 = vunpack.c.l.b16 %v1393
    %v1543 = vunpack.c.h.b16 %v1393
    %v1544 = vunpack.c.l.b16 %v1394
    %v1545 = vunpack.c.h.b16 %v1394
    %v1546 = vunpack.c.l.b16 %v1395
    %v1547 = vunpack.c.h.b16 %v1395
    %v1548 = vunpack.c.l.b16 %v1396
    %v1549 = vunpack.c.h.b16 %v1396
    %v1550 = vunpack.c.l.b16 %v1397
    %v1551 = vunpack.c.h.b16 %v1397
    %v1552 = vunpack.c.l.b16 %v1398
    %v1553 = vunpack.c.h.b16 %v1398
    %v1554 = vunpack.c.l.b16 %v1399
    %v1555 = vunpack.c.h.b16 %v1399
    %v1556 = vunpack.c.l.b16 %v1400
    %v1557 = vunpack.c.h.b16 %v1400
    %v1558 = vunpack.c.l.b16 %v1401
    %v1559 = vunpack.c.h.b16 %v1401
    %v1560 = vunpack.c.l.b16 %v1402
    %v1561 = vunpack.c.h.b16 %v1402
    %v1562 = vunpack.c.l.b16 %v1403
    %v1563 = vunpack.c.h.b16 %v1403
    %v1564 = vunpack.c.l.b16 %v1404
    %v1565 = vunpack.c.h.b16 %v1404
    %v1566 = vunpack.c.l.b16 %v1405
    %v1567 = vunpack.c.h.b16 %v1405
    %v1568 = vunpack.c.l.b16 %v1406
    %v1569 = vunpack.c.h.b16 %v1406
    %v1570 = vunpack.c.l.b16 %v1407
    %v1571 = vunpack.c.h.b16 %v1407
    %v1572 = vunpack.c.l.b16 %v1408
    %v1573 = vunpack.c.h.b16 %v1408
    %v1574 = vunpack.c.l.b16 %v1409
    %v1575 = vunpack.c.h.b16 %v1409
    %v1576 = vunpack.c.l.b16 %v1410
    %v1577 = vunpack.c.h.b16 %v1410
    %v1578 = vunpack.c.l.b16 %v1411
    %v1579 = vunpack.c.h.b16 %v1411
    %v1580 = vunpack.c.l.b16 %v1412
    %v1581 = vunpack.c.h.b16 %v1412
    %v1582 = vunpack.c.l.b16 %v1413
    %v1583 = vunpack.c.h.b16 %v1413
    %v1584 = vunpack.c.l.b16 %v1414
    %v1585 = vunpack.c.h.b16 %v1414
    %v1586 = vunpack.c.l.b16 %v1415
    %v1587 = vunpack.c.h.b16 %v1415
    %v1588 = vunpack.c.l.b16 %v1416
    %v1589 = vunpack.c.h.b16 %v1416
    %v1590 = vunpack.c.l.b16 %v1417
    %v1591 = vunpack.c.h.b16 %v1417
    %v1592 = vunpack.c.l.b16 %v1418
    %v1593 = vunpack.c.h.b16 %v1418
    %v1594 = vunpack.c.l.b16 %v1419
    %v1595 = vunpack.c.h.b16 %v1419
    %v1596 = vunpack.c.l.b16 %v1420
    %v1597 = vunpack.c.h.b16 %v1420
    %v1598 = vunpack.c.l.b16 %v1421
    %v1599 = vunpack.c.h.b16 %v1421
    %v1600 = vunpack.c.l.b16 %v1422
    %v1601 = vunpack.c.h.b16 %v1422
    %v1602 = vunpack.c.l.b16 %v1423
    %v1603 = vunpack.c.h.b16 %v1423
    %v1604 = vunpack.c.l.b16 %v1424
    %v1605 = vunpack.c.h.b16 %v1424
    %v1606 = vunpack.c.l.b16 %v1425
    %v1607 = vunpack.c.h.b16 %v1425
    %v1608 = vunpack.c.l.b16 %v1426
    %v1609 = vunpack.c.h.b16 %v1426
    %v1610 = vunpack.c.l.b16 %v1427
    %v1611 = vunpack.c.h.b16 %v1427
    %v1612 = vunpack.c.l.b16 %v1428
    %v1613 = vunpack.c.h.b16 %v1428
    %v1614 = vunpack.c.l.b16 %v1429
    %v1615 = vunpack.c.h.b16 %v1429
    %v1616 = vunpack.c.l.b16 %v1430
    %v1617 = vunpack.c.h.b16 %v1430
    %v1618 = vunpack.c.l.b16 %v1431
    %v1619 = vunpack.c.h.b16 %v1431
    %v1620 = vunpack.c.l.b16 %v1432
    %v1621 = vunpack.c.h.b16 %v1432
    %v1622 = vunpack.c.l.b16 %v1433
    %v1623 = vunpack.c.h.b16 %v1433
    %v1624 = vunpack.c.l.b16 %v1434
    %v1625 = vunpack.c.h.b16 %v1434
    %v1626 = vunpack.c.l.b16 %v1435
    %v1627 = vunpack.c.h.b16 %v1435
    %v1628 = vunpack.c.l.b16 %v1436
    %v1629 = vunpack.c.h.b16 %v1436
    %v1630 = vunpack.c.l.b16 %v1437
    %v1631 = vunpack.c.h.b16 %v1437
    %v1632 = vunpack.c.l.b16 %v1438
    %v1633 = vunpack.c.h.b16 %v1438
    %v1634 = vunpack.c.l.b16 %v1439
    %v1635 = vunpack.c.h.b16 %v1439
    %v1636 = vunpack.c.l.b16 %v1440
    %v1637 = vunpack.c.h.b16 %v1440
    %v1638 = vunpack.c.l.b16 %v1441
    %v1639 = vunpack.c.h.b16 %v1441
    %v1640 = vunpack.c.l.b16 %v1442
    %v1641 = vunpack.c.h.b16 %v1442
    %v1642 = vunpack.c.l.b16 %v1443
    %v1643 = vunpack.c.h.b16 %v1443
    %v1644 = vunpack.c.l.b16 %v1444
    %v1645 = vunpack.c.h.b16 %v1444
    %v1646 = vunpack.c.l.b16 %v1445
    %v1647 = vunpack.c.h.b16 %v1445
    %v1648 = vunpack.c.l.b16 %v1446
    %v1649 = vunpack.c.h.b16 %v1446
    %v1650 = vunpack.c.l.b16 %v1447
    %v1651 = vunpack.c.h.b16 %v1447
    %v1652 = vunpack.c.l.b16 %v1448
    %v1653 = vunpack.c.h.b16 %v1448
    %v1654 = vunpack.c.l.b16 %v1449
    %v1655 = vunpack.c.h.b16 %v1449
    %v1656 = vunpack.c.l.b16 %v1450
    %v1657 = vunpack.c.h.b16 %v1450
    %v1658 = vunpack.c.l.b16 %v1451
    %v1659 = vunpack.c.h.b16 %v1451
    %v1660 = vpack.c.b16 %v1534, %v1532
    %v1661 = vpack.c.b16 %v1535, %v1533
    %v1662 = vpack.c.b16 %v1538, %v1536
    %v1663 = vpack.c.b16 %v1539, %v1537
    %v1664 = vpack.c.b16 %v1542, %v1540
    %v1665 = vpack.c.b16 %v1543, %v1541
    %v1666 = vpack.c.b16 %v1546, %v1544
    %v1667 = vpack.c.b16 %v1547, %v1545
    %v1668 = vpack.c.b16 %v1550, %v1548
    %v1669 = vpack.c.b16 %v1551, %v1549
    %v1670 = vpack.c.b16 %v1554, %v1552
    %v1671 = vpack.c.b16 %v1555, %v1553
    %v1672 = vpack.c.b16 %v1558, %v1556
    %v1673 = vpack.c.b16 %v1559, %v1557
    %v1674 = vpack.c.b16 %v1562, %v1560
    %v1675 = vpack.c.b16 %v1563, %v1561
    %v1676 = vpack.c.b16 %v1566, %v1564
    %v1677 = vpack.c.b16 %v1567, %v1565
    %v1678 = vpack.c.b16 %v1570, %v1568
    %v1679 = vpack.c.b16 %v1571, %v1569
    %v1680 = vpack.c.b16 %v1574, %v1572
    %v1681 = vpack.c.b16 %v1575, %v1573
    %v1682 = vpack.c.b16 %v1578, %v1576
    %v1683 = vpack.c.b16 %v1579, %v1577
    %v1684 = vpack.c.b16 %v1582, %v1580
    %v1685 = vpack.c.b16 %v1583, %v1581
    %v1686 = vpack.c.b16 %v1586, %v1584
    %v1687 = vpack.c.b16 %v1587, %v1585
    %v1688 = vpack.c.b16 %v1590, %v1588
    %v1689 = vpack.c.b16 %v1591, %v1589
    %v1690 = vpack.c.b16 %v1594, %v1592
    %v1691 = vpack.c.b16 %v1595, %v1593
    %v1692 = vpack.c.b16 %v1598, %v1596
    %v1693 = vpack.c.b16 %v1599, %v1597
    %v1694 = vpack.c.b16 %v1602, %v1600
    %v1695 = vpack.c.b16 %v1603, %v1601
    %v1696 = vpack.c.b16 %v1606, %v1604
    %v1697 = vpack.c.b16 %v1607, %v1605
    %v1698 = vpack.c.b16 %v1610, %v1608
    %v1699 = vpack.c.b16 %v1611, %v1609
    %v1700 = vpack.c.b16 %v1614, %v1612
    %v1701 = vpack.c.b16 %v1615, %v1613
    %v1702 = vpack.c.b16 %v1618, %v1616
    %v1703 = vpack.c.b16 %v1619, %v1617
    %v1704 = vpack.c.b16 %v1622, %v1620
    %v1705 = vpack.c.b16 %v1623, %v1621
    %v1706 = vpack.c.b16 %v1626, %v1624
    %v1707 = vpack.c.b16 %v1627, %v1625
    %v1708 = vpack.c.b16 %v1630, %v1628
    %v1709 = vpack.c.b16 %v1631, %v1629
    %v1710 = vpack.c.b16 %v1634, %v1632
    %v1711 = vpack.c.b16 %v1635, %v1633
    %v1712 = vpack.c.b16 %v1638, %v1636
    %v1713 = vpack.c.b16 %v1639, %v1637
    %v1714 = vpack.c.b16 %v1642, %v1640
    %v1715 = vpack.c.b16 %v1643, %v1641
    %v1716 = vpack.c.b16 %v1646, %v1644
    %v1717 = vpack.c.b16 %v1647, %v1645
    %v1718 = vpack.c.b16 %v1650, %v1648
    %v1719 = vpack.c.b16 %v1651, %v1649
    %v1720 = vpack.c.b16 %v1654, %v1652
    %v1721 = vpack.c.b16 %v1655, %v1653
    %v1722 = vpack.c.b16 %v1658, %v1656
    %v1723 = vpack.c.b16 %v1659, %v1657
    %1788 = vmatprep.subr.bf16.mxu0 %v1661
    %1789 = vmatpush1.bf16.msra.mxu0 %v1660
    %1790 = vmatprep.subr.bf16.mxu0 %v1663
    %1791 = vmatpush1.bf16.msra.mxu0 %v1662
    %1792 = vmatprep.subr.bf16.mxu0 %v1665
    %1793 = vmatpush1.bf16.msra.mxu0 %v1664
    %1794 = vmatprep.subr.bf16.mxu0 %v1667
    %1795 = vmatpush1.bf16.msra.mxu0 %v1666
    %1796 = vmatprep.subr.bf16.mxu0 %v1669
    %1797 = vmatpush1.bf16.msra.mxu0 %v1668
    %1798 = vmatprep.subr.bf16.mxu0 %v1671
    %1799 = vmatpush1.bf16.msra.mxu0 %v1670
    %1800 = vmatprep.subr.bf16.mxu0 %v1673
    %1801 = vmatpush1.bf16.msra.mxu0 %v1672
    %1802 = vmatprep.subr.bf16.mxu0 %v1675
    %1803 = vmatpush1.bf16.msra.mxu0 %v1674
    %1804 = vmatprep.subr.bf16.mxu0 %v1677
    %1805 = vmatpush1.bf16.msra.mxu0 %v1676
    %1806 = vmatprep.subr.bf16.mxu0 %v1679
    %1807 = vmatpush1.bf16.msra.mxu0 %v1678
    %1808 = vmatprep.subr.bf16.mxu0 %v1681
    %1809 = vmatpush1.bf16.msra.mxu0 %v1680
    %1810 = vmatprep.subr.bf16.mxu0 %v1683
    %1811 = vmatpush1.bf16.msra.mxu0 %v1682
    %1812 = vmatprep.subr.bf16.mxu0 %v1685
    %1813 = vmatpush1.bf16.msra.mxu0 %v1684
    %1814 = vmatprep.subr.bf16.mxu0 %v1687
    %1815 = vmatpush1.bf16.msra.mxu0 %v1686
    %1816 = vmatprep.subr.bf16.mxu0 %v1689
    %1817 = vmatpush1.bf16.msra.mxu0 %v1688
    %1818 = vmatprep.subr.bf16.mxu0 %v1691
    %1819 = vmatpush1.bf16.msra.mxu0 %v1690
    %1820 = vmatprep.mubr.bf16.mxu0 %v1385
    %1821 = vmatmul.mubr.bf16.gmra.mrb[0].mxu0 %v1384
    %v1822 = vpop.f32.mrb[0].mxu0
    %v1823 = vadd.f32 %v1461, %v1822
    %v1824 = vpop.f32.mrb[0].mxu0
    %v1825 = vadd.f32 %v1465, %v1824
    %v1826 = vpop.f32.mrb[0].mxu0
    %v1827 = vpop.f32.mrb[0].mxu0
    %1828 = vdwg.mxu0
    %1829 = vmatprep.subr.bf16.mxu0 %v1693
    %1830 = vmatpush1.bf16.msra.mxu0 %v1692
    %1831 = vmatprep.subr.bf16.mxu0 %v1695
    %1832 = vmatpush1.bf16.msra.mxu0 %v1694
    %1833 = vmatprep.subr.bf16.mxu0 %v1697
    %1834 = vmatpush1.bf16.msra.mxu0 %v1696
    %1835 = vmatprep.subr.bf16.mxu0 %v1699
    %1836 = vmatpush1.bf16.msra.mxu0 %v1698
    %1837 = vmatprep.subr.bf16.mxu0 %v1701
    %1838 = vmatpush1.bf16.msra.mxu0 %v1700
    %1839 = vmatprep.subr.bf16.mxu0 %v1703
    %1840 = vmatpush1.bf16.msra.mxu0 %v1702
    %1841 = vmatprep.subr.bf16.mxu0 %v1705
    %1842 = vmatpush1.bf16.msra.mxu0 %v1704
    %1843 = vmatprep.subr.bf16.mxu0 %v1707
    %1844 = vmatpush1.bf16.msra.mxu0 %v1706
    %1845 = vmatprep.subr.bf16.mxu0 %v1709
    %1846 = vmatpush1.bf16.msra.mxu0 %v1708
    %1847 = vmatprep.subr.bf16.mxu0 %v1711
    %1848 = vmatpush1.bf16.msra.mxu0 %v1710
    %1849 = vmatprep.subr.bf16.mxu0 %v1713
    %1850 = vmatpush1.bf16.msra.mxu0 %v1712
    %1851 = vmatprep.subr.bf16.mxu0 %v1715
    %1852 = vmatpush1.bf16.msra.mxu0 %v1714
    %1853 = vmatprep.subr.bf16.mxu0 %v1717
    %1854 = vmatpush1.bf16.msra.mxu0 %v1716
    %1855 = vmatprep.subr.bf16.mxu0 %v1719
    %1856 = vmatpush1.bf16.msra.mxu0 %v1718
    %1857 = vmatprep.subr.bf16.mxu0 %v1721
    %1858 = vmatpush1.bf16.msra.mxu0 %v1720
    %1859 = vmatprep.subr.bf16.mxu0 %v1723
    %1860 = vmatpush1.bf16.msra.mxu0 %v1722
    %1861 = vmatprep.mubr.bf16.mxu0 %v1387
    %1862 = vmatmul.mubr.bf16.gmra.mrb[0].mxu0 %v1386
    %v1863 = vpop.f32.mrb[0].mxu0
    %v1864 = vadd.f32 %v1823, %v1863
    %v1865 = vpop.f32.mrb[0].mxu0
    %v1866 = vadd.f32 %v1825, %v1865
    %v1867 = vpop.f32.mrb[0].mxu0
    %v1868 = vpop.f32.mrb[0].mxu0
    %1869 = vdwg.mxu0
    %v1870 = vadd.f32 %v1864, %v1866
    %1871 = vadd.xlane.f32.xlu0 %v1870
    %v1872 = vpop.xlane.xlu0 %1871
    %v1873 = vrcp.pop 256.0
    %v1874 = vmul.f32 %v1872, %v1873
    %v1875 = vmul.f32 %v1864, %v1864
    %v1876 = vmul.f32 %v1866, %v1866
    %v1877 = vadd.f32 %v1875, %v1876
    %1878 = vadd.xlane.f32.xlu0 %v1877
    %v1879 = vpop.xlane.xlu0 %1878
    %v1880 = vmul.f32 %v1879, %v1873
    %v1881 = vmul.f32 %v1874, %v1874
    %v1882 = vsub.f32 %v1880, %v1881
    %v1883 = vmax.f32 %v1882, 0.0
    %v1884 = vsub.f32 %v1864, %v1874
    %v1885 = vsub.f32 %v1866, %v1874
    %v1886 = vadd.f32 %v1883, 1e-05
    %v1887 = vrsqrt.pop %v1886
    %v1888 = vmul.f32 %v1884, %v1887
    %v1889 = vmul.f32 %v1885, %v1887
    %v1891 = vlaneseq
    %v1892 = vshrl.u32 %v1891, 7
    %v1893 = vsub.s32 0, %v1892
    %v1894 = vrot.slane %v1454, %v1893
    %v1895 = vlaneseq
    %v1896 = vshrl.u32 %v1895, 7
    %v1897 = vsub.s32 1, %v1896
    %v1898 = vrot.slane %v1454, %v1897
    %v1901 = vmul.f32 %v1888, %v1894
    %v1902 = vmul.f32 %v1889, %v1898
    %v1904 = vlaneseq
    %v1905 = vshrl.u32 %v1904, 7
    %v1906 = vsub.s32 0, %v1905
    %v1907 = vrot.slane %v1456, %v1906
    %v1908 = vlaneseq
    %v1909 = vshrl.u32 %v1908, 7
    %v1910 = vsub.s32 1, %v1909
    %v1911 = vrot.slane %v1456, %v1910
    %v1914 = vadd.f32 %v1901, %v1907
    %v1915 = vadd.f32 %v1902, %v1911
    %v1916 = vmax.f32 %v1914, 0.0
    %v1917 = vmax.f32 %v1915, 0.0
    %v1918 = vpack.c.bf16 %v1916, %v1916
    %v1919 = vpack.c.bf16 %v1917, %v1917
    %v1920 = vld [vmem:[#allocation12] sm:$0xf]
    %v1921 = vld [vmem:[#allocation12 + $0x4] sm:$0xf]
    %v1922 = vld [vmem:[#allocation12 + $0x8] sm:$0xf]
    %v1923 = vld [vmem:[#allocation12 + $0xc] sm:$0xf]
    %v1924 = vld [vmem:[#allocation12 + $0x10] sm:$0xf]
    %v1925 = vld [vmem:[#allocation12 + $0x14] sm:$0xf]
    %v1926 = vld [vmem:[#allocation12 + $0x18] sm:$0xf]
    %v1927 = vld [vmem:[#allocation12 + $0x1c] sm:$0xf]
    %v1928 = vld [vmem:[#allocation12 + $0x20] sm:$0xf]
    %v1929 = vld [vmem:[#allocation12 + $0x24] sm:$0xf]
    %v1930 = vld [vmem:[#allocation12 + $0x28] sm:$0xf]
    %v1931 = vld [vmem:[#allocation12 + $0x2c] sm:$0xf]
    %v1932 = vld [vmem:[#allocation12 + $0x30] sm:$0xf]
    %v1933 = vld [vmem:[#allocation12 + $0x34] sm:$0xf]
    %v1934 = vld [vmem:[#allocation12 + $0x38] sm:$0xf]
    %v1935 = vld [vmem:[#allocation12 + $0x3c] sm:$0xf]
    %v1936 = vld [vmem:[#allocation12 + $0x40] sm:$0xf]
    %v1937 = vld [vmem:[#allocation12 + $0x44] sm:$0xf]
    %v1938 = vld [vmem:[#allocation12 + $0x48] sm:$0xf]
    %v1939 = vld [vmem:[#allocation12 + $0x4c] sm:$0xf]
    %v1940 = vld [vmem:[#allocation12 + $0x50] sm:$0xf]
    %v1941 = vld [vmem:[#allocation12 + $0x54] sm:$0xf]
    %v1942 = vld [vmem:[#allocation12 + $0x58] sm:$0xf]
    %v1943 = vld [vmem:[#allocation12 + $0x5c] sm:$0xf]
    %v1944 = vld [vmem:[#allocation12 + $0x60] sm:$0xf]
    %v1945 = vld [vmem:[#allocation12 + $0x64] sm:$0xf]
    %v1946 = vld [vmem:[#allocation12 + $0x68] sm:$0xf]
    %v1947 = vld [vmem:[#allocation12 + $0x6c] sm:$0xf]
    %v1948 = vld [vmem:[#allocation12 + $0x70] sm:$0xf]
    %v1949 = vld [vmem:[#allocation12 + $0x74] sm:$0xf]
    %v1950 = vld [vmem:[#allocation12 + $0x78] sm:$0xf]
    %v1951 = vld [vmem:[#allocation12 + $0x7c] sm:$0xf]
    %v1952 = vld [vmem:[%s9] sm:$0x1]
    %v1954 = vlaneseq
    %v1955 = vshrl.u32 %v1954, 7
    %v1956 = vsub.s32 0, %v1955
    %v1957 = vrot.slane %v1952, %v1956
    %v1991 = vunpack.c.l.b16 %v1920
    %v1992 = vunpack.c.l.b16 %v1921
    %v1993 = vunpack.c.l.b16 %v1922
    %v1994 = vunpack.c.l.b16 %v1923
    %v1995 = vunpack.c.l.b16 %v1924
    %v1996 = vunpack.c.l.b16 %v1925
    %v1997 = vunpack.c.l.b16 %v1926
    %v1998 = vunpack.c.l.b16 %v1927
    %v1999 = vunpack.c.l.b16 %v1928
    %v2000 = vunpack.c.l.b16 %v1929
    %v2001 = vunpack.c.l.b16 %v1930
    %v2002 = vunpack.c.l.b16 %v1931
    %v2003 = vunpack.c.l.b16 %v1932
    %v2004 = vunpack.c.l.b16 %v1933
    %v2005 = vunpack.c.l.b16 %v1934
    %v2006 = vunpack.c.l.b16 %v1935
    %v2007 = vunpack.c.l.b16 %v1936
    %v2008 = vunpack.c.l.b16 %v1937
    %v2009 = vunpack.c.l.b16 %v1938
    %v2010 = vunpack.c.l.b16 %v1939
    %v2011 = vunpack.c.l.b16 %v1940
    %v2012 = vunpack.c.l.b16 %v1941
    %v2013 = vunpack.c.l.b16 %v1942
    %v2014 = vunpack.c.l.b16 %v1943
    %v2015 = vunpack.c.l.b16 %v1944
    %v2016 = vunpack.c.l.b16 %v1945
    %v2017 = vunpack.c.l.b16 %v1946
    %v2018 = vunpack.c.l.b16 %v1947
    %v2019 = vunpack.c.l.b16 %v1948
    %v2020 = vunpack.c.l.b16 %v1949
    %v2021 = vunpack.c.l.b16 %v1950
    %v2022 = vunpack.c.l.b16 %v1951
    %v2023 = vpack.c.b16 %v1992, %v1991
    %v2024 = vpack.c.b16 %v1994, %v1993
    %v2025 = vpack.c.b16 %v1996, %v1995
    %v2026 = vpack.c.b16 %v1998, %v1997
    %v2027 = vpack.c.b16 %v2000, %v1999
    %v2028 = vpack.c.b16 %v2002, %v2001
    %v2029 = vpack.c.b16 %v2004, %v2003
    %v2030 = vpack.c.b16 %v2006, %v2005
    %v2031 = vpack.c.b16 %v2008, %v2007
    %v2032 = vpack.c.b16 %v2010, %v2009
    %v2033 = vpack.c.b16 %v2012, %v2011
    %v2034 = vpack.c.b16 %v2014, %v2013
    %v2035 = vpack.c.b16 %v2016, %v2015
    %v2036 = vpack.c.b16 %v2018, %v2017
    %v2037 = vpack.c.b16 %v2020, %v2019
    %v2038 = vpack.c.b16 %v2022, %v2021
    %2055 = vmatprep.subr.bf16.mxu0 0
    %2056 = vmatpush1.bf16.msra.mxu0 %v2023
    %2057 = vmatprep.subr.bf16.mxu0 0
    %2058 = vmatpush1.bf16.msra.mxu0 %v2024
    %2059 = vmatprep.subr.bf16.mxu0 0
    %2060 = vmatpush1.bf16.msra.mxu0 %v2025
    %2061 = vmatprep.subr.bf16.mxu0 0
    %2062 = vmatpush1.bf16.msra.mxu0 %v2026
    %2063 = vmatprep.subr.bf16.mxu0 0
    %2064 = vmatpush1.bf16.msra.mxu0 %v2027
    %2065 = vmatprep.subr.bf16.mxu0 0
    %2066 = vmatpush1.bf16.msra.mxu0 %v2028
    %2067 = vmatprep.subr.bf16.mxu0 0
    %2068 = vmatpush1.bf16.msra.mxu0 %v2029
    %2069 = vmatprep.subr.bf16.mxu0 0
    %2070 = vmatpush1.bf16.msra.mxu0 %v2030
    %2071 = vmatprep.subr.bf16.mxu0 0
    %2072 = vmatpush1.bf16.msra.mxu0 %v2031
    %2073 = vmatprep.subr.bf16.mxu0 0
    %2074 = vmatpush1.bf16.msra.mxu0 %v2032
    %2075 = vmatprep.subr.bf16.mxu0 0
    %2076 = vmatpush1.bf16.msra.mxu0 %v2033
    %2077 = vmatprep.subr.bf16.mxu0 0
    %2078 = vmatpush1.bf16.msra.mxu0 %v2034
    %2079 = vmatprep.subr.bf16.mxu0 0
    %2080 = vmatpush1.bf16.msra.mxu0 %v2035
    %2081 = vmatprep.subr.bf16.mxu0 0
    %2082 = vmatpush1.bf16.msra.mxu0 %v2036
    %2083 = vmatprep.subr.bf16.mxu0 0
    %2084 = vmatpush1.bf16.msra.mxu0 %v2037
    %2085 = vmatprep.subr.bf16.mxu0 0
    %2086 = vmatpush1.bf16.msra.mxu0 %v2038
    %2087 = vmatprep.mubr.bf16.mxu0 %v1919
    %2088 = vmatmul.mubr.bf16.gmra.mrb[0].mxu0 %v1918
    %v2089 = vpop.f32.mrb[0].mxu0
    %v2090 = vadd.f32 %v1957, %v2089
    %v2091 = vpop.f32.mrb[0].mxu0
    %v2092 = vpop.f32.mrb[0].mxu0
    %v2093 = vpop.f32.mrb[0].mxu0
    %2094 = vdwg.mxu0
    %v2095 = vtanh.pop %v2090
    %v2096 = vstv %s116
    %v2097 = vmul.f32 %v2096, %v2095
    %2098 = vst [vmem:[#allocation14] sm:$0xff] %v2097
    // Predicated region
    $region66: #{tpu_custom_call.1} parent=1 // pred_check
      _
    $region67: #{tpu_custom_call.1} parent=1 // pred_check_branch
      %2100 = sbr.rel (0) target = $region69
    $region68: #{tpu_custom_call.1} parent=1 // pred_region
      %s2102 = ssub.s32 128, 128
      %2103 = vsyncadd [#allocation5], %s2102
      %s2105 = sshll.u32 [#allocation14], 4
      %s2106 = int_to_ptr.vmem [resolvable:$true] %s2105
      %2108 = dma.vmem_to_hbm [thread:$0]  %s2106, 128, %s10, [#allocation5]
    $region69: #{tpu_custom_call.1} parent=1 // pred_fallthru
      _
    // Predicated region
    $region70: #{tpu_custom_call.1} parent=1 // pred_check
      _
    $region71: #{tpu_custom_call.1} parent=1 // pred_check_branch
      %2110 = sbr.rel (0) target = $region73
    $region72: #{tpu_custom_call.1} parent=1 // pred_region
      %2111 = dma.done [#allocation5], 128
    $region73: #{tpu_custom_call.1} parent=1 // pred_fallthru
      _
    %2112 = vsyncpa [#allocation4], 1
    %2113 = vsyncpa [#allocation7], 1
    %2114 = vsyncpa [#allocation10], 1
    %2115 = vsyncpa [#allocation13], 1
    %2116 = vsyncpa [#allocation5], 1

</llo_original>
